<compile_context>
chip_gen: v7x
topology: tpu7x:2x2x1
jax: 0.10.0
libtpu: 0.0.40
codegen_flags: <defaults>
</compile_context>

<pallas_src>
import functools

import jax
import jax.numpy as jnp
from jax import lax
from jax.experimental import pallas as pl
from jax.experimental.pallas import tpu as pltpu

_MiB = 1024 * 1024


# ----------------------------------------------------------------------------
# Kernels
# ----------------------------------------------------------------------------
def _lstm_step_kernel(xp_ref, h0_ref, c0_ref, whh_ref,
                      hs_ref, hN_ref, cN_ref):
    """One LSTM timestep; grid axis 0 is time ("arbitrary").

    xp_ref : (1, Bp, 4*Hp) f32   precomputed x@Wih + b for this step (streamed)
    h0/c0  : (Bp, Hp)      f32   initial hidden / cell state (used at t == 0)
    whh    : (Hp, 4*Hp)    bf16  hidden->gates weights (resident)
    hs_ref : (1, Bp, Hp)   bf16  per-step hidden state (streamed out)
    hN/cN  : (Bp, Hp)      f32   final h / c; constant block index => resident
                                  across the grid, doubling as the carry.
    """
    t = pl.program_id(0)
    Hp = h0_ref.shape[1]

    @pl.when(t == 0)
    def _():
        hN_ref[...] = h0_ref[...]
        cN_ref[...] = c0_ref[...]

    h = hN_ref[...]
    c = cN_ref[...]

    # TODO(synk): at Bp~8 this matmul is MXU-weight-push bound; holding Whh
    # stationary via pltpu.matmul_push_rhs would cut per-step cost further,
    # left out here for portability/robustness.
    gates = xp_ref[0] + jnp.dot(h.astype(whh_ref.dtype), whh_ref[...],
                                preferred_element_type=jnp.float32)

    # PyTorch gate order: i, f, g, o — each block is Hp (lane) aligned.
    i_g = jax.nn.sigmoid(gates[:, 0 * Hp:1 * Hp])
    f_g = jax.nn.sigmoid(gates[:, 1 * Hp:2 * Hp])
    g_g = jnp.tanh(gates[:, 2 * Hp:3 * Hp])
    o_g = jax.nn.sigmoid(gates[:, 3 * Hp:4 * Hp])
    c_new = f_g * c + i_g * g_g
    h_new = o_g * jnp.tanh(c_new)

    hs_ref[0] = h_new.astype(hs_ref.dtype)
    hN_ref[...] = h_new
    cN_ref[...] = c_new


def _decoder_kernel(hs_ref, wdec_ref, bdec_ref, out_ref):
    """Decoder + log_softmax for one (tm, Hp) row tile.

    hs_ref  : (tm, Hp)  bf16 hidden states tile
    wdec    : (Hp, Tp)  bf16 decoder weights (resident / single-buffered)
    bdec    : (1, Tp)   f32 decoder bias; padded vocab columns are -1e30
    out_ref : (tm, Tp)  f32 log-softmax logits tile
    """
    logits = jnp.dot(hs_ref[...], wdec_ref[...],
                     preferred_element_type=jnp.float32) + bdec_ref[...]
    m = jnp.max(logits, axis=-1, keepdims=True)
    shifted = logits - m
    lse = jnp.log(jnp.sum(jnp.exp(shifted), axis=-1, keepdims=True))
    out_ref[...] = shifted - lse


# ----------------------------------------------------------------------------
# Padding / sizing helpers
# ----------------------------------------------------------------------------
def _round_up(x, m):
    return (x + m - 1) // m * m


def _pad_to(x, shape):
    pads = [(0, t - s) for s, t in zip(x.shape, shape)]
    return jnp.pad(x, pads)


def _pad_gate_cols(w, H, Hp):
    """Pad the last axis (4*H, gate order i|f|g|o) to 4*Hp, per gate block."""
    lead = w.shape[:-1]
    w4 = w.reshape(lead + (4, H))
    w4 = jnp.pad(w4, [(0, 0)] * len(lead) + [(0, 0), (0, Hp - H)])
    return w4.reshape(lead + (4 * Hp,))


def _vmem_capacity_bytes():
    """Per-TensorCore VMEM, generation-aware; conservative fallback."""
    try:
        return int(pltpu.get_tpu_info().vmem_capacity_bytes)
    except Exception:
        return 64 * _MiB  # v7x per-TC VMEM — safe lower bound everywhere.


def _vmem_limit(nbytes, cap):
    """2x headroom for compiler temporaries, capped below physical VMEM."""
    return int(min(cap, max(4 * _MiB, 2 * nbytes)))


def _const_spec(block_shape, index_map, single_buffer):
    """BlockSpec for a constant-index-map operand (weights); single-buffered
    when supported so a never-re-DMA'd weight does not hold two VMEM copies."""
    if single_buffer:
        try:
            return pl.BlockSpec(block_shape, index_map,
                                pipeline_mode=pl.Buffered(1))
        except TypeError:
            pass
    return pl.BlockSpec(block_shape, index_map)


def _pick_row_tile(Mp, Hp, Tp, vmem_budget):
    """Largest row tile that divides Mp and fits the VMEM budget; keep >=2
    grid steps when possible so megacore sharding has work to split."""
    best = 8
    for tm in (1024, 512, 256, 128, 64, 32, 16, 8):
        if Mp % tm:
            continue
        tile_bytes = (2 * tm * Hp * 2      # hs tile (bf16, double buffered)
                      + 2 * tm * Tp * 4    # out tile (f32, double buffered)
                      + Hp * Tp * 2        # wdec (bf16, single buffered)
                      + Tp * 4             # bdec
                      + 2 * tm * Tp * 4)   # logits / compute temporaries
        if tile_bytes <= vmem_budget:
            best = tm
            break
    while best > 8 and Mp // best < 2:
        best //= 2
    return best


# ----------------------------------------------------------------------------
# Forward wrapper
# ----------------------------------------------------------------------------
def language_model_forward(token_ids, hidden, params, *,
                           single_buffer_consts=True):
    """token_ids: (S, B) int32; hidden: (h0, c0), each (n_layers=1, B, H)."""
    emb_w = params["emb"]
    wih, whh, bias = params["wih"], params["whh"], params["bias"]
    wdec, bdec = params["wdec"], params["bdec"]

    S, B = token_ids.shape
    H = whh.shape[0]
    T = wdec.shape[1]

    # TPU tile-granular padded sizes (sublane=8, lane=128).
    Bp = _round_up(B, 8)
    Hp = _round_up(H, 128)
    Tp = _round_up(T, 128)
    Mp = S * Bp

    bf16 = jnp.bfloat16
    cap = _vmem_capacity_bytes()
    vmem_cap = max(cap - 16 * _MiB, cap * 3 // 4)  # headroom below physical

    # --- Embedding folded into the input projection -------------------------
    # Precompute the per-token gate pre-activation table once (bf16 weights,
    # f32 accumulation), then gather rows by token id.  Zero padding of the
    # per-gate columns keeps padded hidden lanes exactly zero downstream.
    xproj_table = (jnp.dot(emb_w.astype(bf16), wih.astype(bf16),
                           preferred_element_type=jnp.float32)
                   + bias)                                        # (n_token, 4H) f32
    xproj_table = _pad_gate_cols(xproj_table, H, Hp)              # (n_token, 4Hp)
    xproj = xproj_table[token_ids]                                # (S, B, 4Hp)
    xproj_p = _pad_to(xproj, (S, Bp, 4 * Hp))                     # f32

    h0_p = _pad_to(hidden[0][0], (Bp, Hp))
    c0_p = _pad_to(hidden[1][0], (Bp, Hp))
    whh_p = _pad_gate_cols(_pad_to(whh, (Hp, 4 * H)), H, Hp).astype(bf16)

    wdec_p = _pad_to(wdec, (Hp, Tp)).astype(bf16)
    # Padded vocab columns get a -1e30 bias so log_softmax ignores them.
    bdec_p = jnp.full((1, Tp), -1e30, jnp.float32).at[:, :T].set(bdec)

    # ---- Kernel 1: LSTM recurrence, gridded over time ------------------------
    k1_resident = (2 * Bp * 4 * Hp * 4       # xproj slice (double buffered)
                   + Hp * 4 * Hp * 2         # whh (single buffered)
                   + 4 * Bp * Hp * 4         # h0, c0
                   + 2 * Bp * Hp * 2         # hs slice (double buffered)
                   + 2 * Bp * Hp * 4)        # hN, cN resident carry
    k1_cost = pl.CostEstimate(
        flops=2 * S * Bp * Hp * (4 * Hp),
        transcendentals=6 * S * Bp * Hp,
        bytes_accessed=(S * Bp * 4 * Hp * 4 + Hp * 4 * Hp * 2
                        + S * Bp * Hp * 2 + 4 * Bp * Hp * 4))

    hs, hN, cN = pl.pallas_call(
        _lstm_step_kernel,
        out_shape=(
            jax.ShapeDtypeStruct((S, Bp, Hp), bf16),          # all hidden states
            jax.ShapeDtypeStruct((Bp, Hp), jnp.float32),      # final h
            jax.ShapeDtypeStruct((Bp, Hp), jnp.float32),      # final c
        ),
        grid_spec=pltpu.PrefetchScalarGridSpec(
            num_scalar_prefetch=0,
            grid=(S,),
            in_specs=[
                pl.BlockSpec((1, Bp, 4 * Hp), lambda t: (t, 0, 0)),
                pl.BlockSpec((Bp, Hp), lambda t: (0, 0)),
                pl.BlockSpec((Bp, Hp), lambda t: (0, 0)),
                _const_spec((Hp, 4 * Hp), lambda t: (0, 0),
                            single_buffer_consts),
            ],
            out_specs=[
                pl.BlockSpec((1, Bp, Hp), lambda t: (t, 0, 0)),
                pl.BlockSpec((Bp, Hp), lambda t: (0, 0)),
                pl.BlockSpec((Bp, Hp), lambda t: (0, 0)),
            ]),
        compiler_params=pltpu.CompilerParams(
            dimension_semantics=("arbitrary",),
            vmem_limit_bytes=_vmem_limit(k1_resident, vmem_cap)),
        cost_estimate=k1_cost,
    )(xproj_p, h0_p, c0_p, whh_p)

    # ---- Kernel 2: decoder + log_softmax, gridded over row tiles -------------
    hs2d = hs.reshape(Mp, Hp)                                    # bf16
    tm = _pick_row_tile(Mp, Hp, Tp, int(0.8 * vmem_cap))
    k2_resident = (2 * tm * Hp * 2 + 2 * tm * Tp * 4
                   + Hp * Tp * 2 + Tp * 4 + 2 * tm * Tp * 4)
    k2_cost = pl.CostEstimate(
        flops=2 * Mp * Hp * Tp,
        transcendentals=Mp * Tp,
        bytes_accessed=Mp * Hp * 2 + Hp * Tp * 2 + Mp * Tp * 4)

    out_p = pl.pallas_call(
        _decoder_kernel,
        out_shape=jax.ShapeDtypeStruct((Mp, Tp), jnp.float32),
        grid_spec=pltpu.PrefetchScalarGridSpec(
            num_scalar_prefetch=0,
            grid=(Mp // tm,),
            in_specs=[
                pl.BlockSpec((tm, Hp), lambda i: (i, 0)),
                _const_spec((Hp, Tp), lambda i: (0, 0), single_buffer_consts),
                _const_spec((1, Tp), lambda i: (0, 0), single_buffer_consts),
            ],
            out_specs=pl.BlockSpec((tm, Tp), lambda i: (i, 0))),
        compiler_params=pltpu.CompilerParams(
            dimension_semantics=("parallel",),
            vmem_limit_bytes=_vmem_limit(k2_resident, vmem_cap)),
        cost_estimate=k2_cost,
    )(hs2d, wdec_p, bdec_p)

    # Strip padding; (S, B) -> S*B flatten matches lstm_output.view(S*B, H).
    out = out_p.reshape(S, Bp, Tp)[:, :B, :T].reshape(S * B, T)
    hN = hN[:B, :H][None]
    cN = cN[:B, :H][None]
    return out, (hN, cN)


# ----------------------------------------------------------------------------
# Params / reference
# ----------------------------------------------------------------------------
def init_params(key, n_token, n_input, n_hidden):
    """Deterministic init mirroring the PyTorch module's init_weights()."""
    k_emb, k_wih, k_whh, k_bih, k_bhh, k_dec = jax.random.split(key, 6)
    n_range = 0.1
    bound = 1.0 / jnp.sqrt(n_hidden)
    emb = jax.random.uniform(k_emb, (n_token, n_input), jnp.float32,
                             -n_range, n_range)
    weight_ih = jax.random.uniform(k_wih, (4 * n_hidden, n_input), jnp.float32,
                                   -bound, bound)
    weight_hh = jax.random.uniform(k_whh, (4 * n_hidden, n_hidden), jnp.float32,
                                   -bound, bound)
    b_ih = jax.random.uniform(k_bih, (4 * n_hidden,), jnp.float32, -bound, bound)
    b_hh = jax.random.uniform(k_bhh, (4 * n_hidden,), jnp.float32, -bound, bound)
    dec_w = jax.random.uniform(k_dec, (n_token, n_hidden), jnp.float32,
                               -n_range, n_range)
    dec_b = jnp.zeros((n_token,), jnp.float32)
    return {
        "emb": emb,
        "wih": weight_ih.T,                    # (I, 4H)
        "whh": weight_hh.T,                    # (H, 4H)
        "bias": (b_ih + b_hh)[None, :],        # (1, 4H)
        "wdec": dec_w.T,                       # (H, T)
        "bdec": dec_b[None, :],                # (1, T)
    }


def _reference_forward(token_ids, hidden, params):
    """Pure-JAX reference using the same bf16-weights / f32-accumulate math.

    NOTE: the whole pipeline intentionally quantizes weights/activations to
    bf16 for the MXU; expect ~1e-3-level deviation from a pure-f32 PyTorch run.
    """
    bf16 = jnp.bfloat16
    emb = params["emb"][token_ids].astype(bf16)
    wih = params["wih"].astype(bf16)
    whh = params["whh"].astype(bf16)
    wdec = params["wdec"].astype(bf16)
    bias, bdec = params["bias"], params["bdec"]
    H = params["whh"].shape[0]

    def step(carry, x_t):
        h, c = carry
        gates = (jnp.dot(x_t, wih, preferred_element_type=jnp.float32)
                 + jnp.dot(h.astype(bf16), whh,
                           preferred_element_type=jnp.float32)
                 + bias)
        i_g = jax.nn.sigmoid(gates[:, 0 * H:1 * H])
        f_g = jax.nn.sigmoid(gates[:, 1 * H:2 * H])
        g_g = jnp.tanh(gates[:, 2 * H:3 * H])
        o_g = jax.nn.sigmoid(gates[:, 3 * H:4 * H])
        c_new = f_g * c + i_g * g_g
        h_new = o_g * jnp.tanh(c_new)
        return (h_new, c_new), h_new

    (hN, cN), hs = lax.scan(step, (hidden[0][0], hidden[1][0]), emb)
    logits = (jnp.dot(hs.reshape(-1, H).astype(bf16), wdec,
                      preferred_element_type=jnp.float32) + bdec)
    return jax.nn.log_softmax(logits, axis=1), (hN[None], cN[None])


# ----------------------------------------------------------------------------
# Main
# ----------------------------------------------------------------------------
if __name__ == "__main__":
    n_token, n_input, n_hidden, n_layers = 16, 32, 32, 1
    seq_len, batch = 8, 2

    key = jax.random.PRNGKey(0)
    k_params, k_tokens = jax.random.split(key)
    params = init_params(k_params, n_token, n_input, n_hidden)

    token_ids = jax.random.randint(k_tokens, (seq_len, batch), 0, n_token,
                                   dtype=jnp.int32)
    hidden = (jnp.zeros((n_layers, batch, n_hidden), jnp.float32),
              jnp.zeros((n_layers, batch, n_hidden), jnp.float32))

    def _run(single_buffer_consts):
        fwd = jax.jit(functools.partial(
            language_model_forward,
            single_buffer_consts=single_buffer_consts))
        out, (hN, cN) = fwd(token_ids, hidden, params)
        return (jax.block_until_ready(out),
                jax.block_until_ready(hN),
                jax.block_until_ready(cN))

    try:
        out, hN, cN = _run(True)
    except Exception:
        # Fall back if this JAX/Mosaic build rejects single-buffered BlockSpecs.
        out, hN, cN = _run(False)

    # Validate against the pure-JAX reference.
    ref_out, (ref_h, ref_c) = _reference_forward(token_ids, hidden, params)
    assert out.shape == (seq_len * batch, n_token)
    assert hN.shape == (n_layers, batch, n_hidden)
    assert cN.shape == (n_layers, batch, n_hidden)
    assert jnp.allclose(out, ref_out, atol=2e-3), \
        float(jnp.max(jnp.abs(out - ref_out)))
    assert jnp.allclose(hN, ref_h, atol=2e-3)
    assert jnp.allclose(cN, ref_c, atol=2e-3)

    print("KERNEL_OK")
</pallas_src>

<mosaic_0001>
module attributes {stable_mosaic.version = 11 : i64} {
  func.func @_lstm_step_kernel(%arg0: i32, %arg1: memref<1x8x512xf32, #tpu.memory_space<vmem>>, %arg2: memref<8x128xf32, #tpu.memory_space<vmem>>, %arg3: memref<8x128xf32, #tpu.memory_space<vmem>>, %arg4: memref<128x512xbf16, #tpu.memory_space<vmem>>, %arg5: memref<1x8x128xbf16, #tpu.memory_space<vmem>>, %arg6: memref<8x128xf32, #tpu.memory_space<vmem>>, %arg7: memref<8x128xf32, #tpu.memory_space<vmem>>) attributes {dimension_semantics = [#tpu.dimension_semantics<arbitrary>], iteration_bounds = array<i64: 8>, scalar_prefetch = 0 : i64, scratch_operands = 0 : i64, tpu.core_type = #tpu.core_type<tc>, window_params = [{transform_indices = @transform_0, window_bounds = array<i64: 1, 8, 512>}, {pipeline_mode = #tpu.pipeline_mode<synchronous>, transform_indices = @transform_1, window_bounds = array<i64: 8, 128>}, {pipeline_mode = #tpu.pipeline_mode<synchronous>, transform_indices = @transform_2, window_bounds = array<i64: 8, 128>}, {pipeline_mode = #tpu.pipeline_mode<synchronous>, transform_indices = @transform_3, window_bounds = array<i64: 128, 512>}, {transform_indices = @transform_4, window_bounds = array<i64: 1, 8, 128>}, {pipeline_mode = #tpu.pipeline_mode<synchronous>, transform_indices = @transform_5, window_bounds = array<i64: 8, 128>}, {pipeline_mode = #tpu.pipeline_mode<synchronous>, transform_indices = @transform_6, window_bounds = array<i64: 8, 128>}]} {
    %c0_i32 = arith.constant 0 : i32
    %0 = arith.cmpi eq, %arg0, %c0_i32 : i32
    %1 = arith.extui %0 : i1 to i32
    %c0_i32_0 = arith.constant 0 : i32
    %2 = arith.cmpi ne, %1, %c0_i32_0 : i32
    scf.if %2 {
      %c0_19 = arith.constant 0 : index
      %c0_20 = arith.constant 0 : index
      %42 = vector.load %arg2[%c0_19, %c0_20] : memref<8x128xf32, #tpu.memory_space<vmem>>, vector<8x128xf32>
      %c0_21 = arith.constant 0 : index
      %c0_22 = arith.constant 0 : index
      %43 = vector.load %arg6[%c0_21, %c0_22] : memref<8x128xf32, #tpu.memory_space<vmem>>, vector<8x128xf32>
      tpu.vector_store %arg6[%c0_21, %c0_22], %42 {strides = array<i32>} : memref<8x128xf32, #tpu.memory_space<vmem>>, vector<8x128xf32>,
      %c0_23 = arith.constant 0 : index
      %c0_24 = arith.constant 0 : index
      %44 = vector.load %arg3[%c0_23, %c0_24] : memref<8x128xf32, #tpu.memory_space<vmem>>, vector<8x128xf32>
      %c0_25 = arith.constant 0 : index
      %c0_26 = arith.constant 0 : index
      %45 = vector.load %arg7[%c0_25, %c0_26] : memref<8x128xf32, #tpu.memory_space<vmem>>, vector<8x128xf32>
      tpu.vector_store %arg7[%c0_25, %c0_26], %44 {strides = array<i32>} : memref<8x128xf32, #tpu.memory_space<vmem>>, vector<8x128xf32>,
    } else {
    }
    %c0 = arith.constant 0 : index
    %c0_1 = arith.constant 0 : index
    %3 = vector.load %arg6[%c0, %c0_1] : memref<8x128xf32, #tpu.memory_space<vmem>>, vector<8x128xf32>
    %c0_2 = arith.constant 0 : index
    %c0_3 = arith.constant 0 : index
    %4 = vector.load %arg7[%c0_2, %c0_3] : memref<8x128xf32, #tpu.memory_space<vmem>>, vector<8x128xf32>
    %c0_4 = arith.constant 0 : index
    %c0_5 = arith.constant 0 : index
    %c0_6 = arith.constant 0 : index
    %5 = vector.load %arg1[%c0_4, %c0_5, %c0_6] : memref<1x8x512xf32, #tpu.memory_space<vmem>>, vector<1x8x512xf32>
    %6 = vector.shape_cast %5 : vector<1x8x512xf32> to vector<8x512xf32>
    %7 = arith.truncf %3 : vector<8x128xf32> to vector<8x128xbf16>
    %c0_7 = arith.constant 0 : index
    %c0_8 = arith.constant 0 : index
    %8 = vector.load %arg4[%c0_7, %c0_8] : memref<128x512xbf16, #tpu.memory_space<vmem>>, vector<128x512xbf16>
    %cst = arith.constant dense<0.000000e+00> : vector<8x512xf32>
    %9 = tpu.matmul %7, %8, %cst {dimension_numbers = #tpu.dot_dimension_numbers<[1], [0], [0], [1], [0, 0, 1, 1], [], []>} : vector<8x128xbf16>, vector<128x512xbf16>, vector<8x512xf32> -> vector<8x512xf32>
    %10 = arith.addf %6, %9 : vector<8x512xf32>
    %11 = vector.extract_strided_slice %10 {offsets = [0, 0], sizes = [8, 128], strides = [1, 1]} : vector<8x512xf32> to vector<8x128xf32>
    %12 = arith.negf %11 : vector<8x128xf32>
    %13 = math.exp %12 : vector<8x128xf32>
    %cst_9 = arith.constant 1.000000e+00 : f32
    %14 = vector.broadcast %cst_9 : f32 to vector<8x128xf32>
    %15 = arith.addf %14, %13 : vector<8x128xf32>
    %16 = arith.divf %14, %15 : vector<8x128xf32>
    %17 = vector.extract_strided_slice %10 {offsets = [0, 128], sizes = [8, 128], strides = [1, 1]} : vector<8x512xf32> to vector<8x128xf32>
    %18 = arith.negf %17 : vector<8x128xf32>
    %19 = math.exp %18 : vector<8x128xf32>
    %cst_10 = arith.constant 1.000000e+00 : f32
    %20 = vector.broadcast %cst_10 : f32 to vector<8x128xf32>
    %21 = arith.addf %20, %19 : vector<8x128xf32>
    %22 = arith.divf %20, %21 : vector<8x128xf32>
    %23 = vector.extract_strided_slice %10 {offsets = [0, 256], sizes = [8, 128], strides = [1, 1]} : vector<8x512xf32> to vector<8x128xf32>
    %24 = math.tanh %23 : vector<8x128xf32>
    %25 = vector.extract_strided_slice %10 {offsets = [0, 384], sizes = [8, 128], strides = [1, 1]} : vector<8x512xf32> to vector<8x128xf32>
    %26 = arith.negf %25 : vector<8x128xf32>
    %27 = math.exp %26 : vector<8x128xf32>
    %cst_11 = arith.constant 1.000000e+00 : f32
    %28 = vector.broadcast %cst_11 : f32 to vector<8x128xf32>
    %29 = arith.addf %28, %27 : vector<8x128xf32>
    %30 = arith.divf %28, %29 : vector<8x128xf32>
    %31 = arith.mulf %22, %4 : vector<8x128xf32>
    %32 = arith.mulf %16, %24 : vector<8x128xf32>
    %33 = arith.addf %31, %32 : vector<8x128xf32>
    %34 = math.tanh %33 : vector<8x128xf32>
    %35 = arith.mulf %30, %34 : vector<8x128xf32>
    %36 = arith.truncf %35 : vector<8x128xf32> to vector<8x128xbf16>
    %c0_12 = arith.constant 0 : index
    %c0_13 = arith.constant 0 : index
    %c0_14 = arith.constant 0 : index
    %37 = vector.load %arg5[%c0_12, %c0_13, %c0_14] : memref<1x8x128xbf16, #tpu.memory_space<vmem>>, vector<1x8x128xbf16>
    %38 = vector.shape_cast %37 : vector<1x8x128xbf16> to vector<8x128xbf16>
    %39 = vector.shape_cast %36 : vector<8x128xbf16> to vector<1x8x128xbf16>
    tpu.vector_store %arg5[%c0_12, %c0_13, %c0_14], %39 {strides = array<i32>} : memref<1x8x128xbf16, #tpu.memory_space<vmem>>, vector<1x8x128xbf16>,
    %c0_15 = arith.constant 0 : index
    %c0_16 = arith.constant 0 : index
    %40 = vector.load %arg6[%c0_15, %c0_16] : memref<8x128xf32, #tpu.memory_space<vmem>>, vector<8x128xf32>
    tpu.vector_store %arg6[%c0_15, %c0_16], %35 {strides = array<i32>} : memref<8x128xf32, #tpu.memory_space<vmem>>, vector<8x128xf32>,
    %c0_17 = arith.constant 0 : index
    %c0_18 = arith.constant 0 : index
    %41 = vector.load %arg7[%c0_17, %c0_18] : memref<8x128xf32, #tpu.memory_space<vmem>>, vector<8x128xf32>
    tpu.vector_store %arg7[%c0_17, %c0_18], %33 {strides = array<i32>} : memref<8x128xf32, #tpu.memory_space<vmem>>, vector<8x128xf32>,
    return
  }
  func.func @transform_0(%arg0: i32) -> (i32, i32, i32) {
    %c0_i32 = arith.constant 0 : i32
    %c0_i32_0 = arith.constant 0 : i32
    %c0_i32_1 = arith.constant 0 : i32
    return %arg0, %c0_i32, %c0_i32_0 : i32, i32, i32
  }
  func.func @transform_1(%arg0: i32) -> (i32, i32) {
    %c0_i32 = arith.constant 0 : i32
    %c0_i32_0 = arith.constant 0 : i32
    %c0_i32_1 = arith.constant 0 : i32
    return %c0_i32, %c0_i32_0 : i32, i32
  }
  func.func @transform_2(%arg0: i32) -> (i32, i32) {
    %c0_i32 = arith.constant 0 : i32
    %c0_i32_0 = arith.constant 0 : i32
    %c0_i32_1 = arith.constant 0 : i32
    return %c0_i32, %c0_i32_0 : i32, i32
  }
  func.func @transform_3(%arg0: i32) -> (i32, i32) {
    %c0_i32 = arith.constant 0 : i32
    %c0_i32_0 = arith.constant 0 : i32
    %c0_i32_1 = arith.constant 0 : i32
    return %c0_i32, %c0_i32_0 : i32, i32
  }
  func.func @transform_4(%arg0: i32) -> (i32, i32, i32) {
    %c0_i32 = arith.constant 0 : i32
    %c0_i32_0 = arith.constant 0 : i32
    %c0_i32_1 = arith.constant 0 : i32
    return %arg0, %c0_i32, %c0_i32_0 : i32, i32, i32
  }
  func.func @transform_5(%arg0: i32) -> (i32, i32) {
    %c0_i32 = arith.constant 0 : i32
    %c0_i32_0 = arith.constant 0 : i32
    %c0_i32_1 = arith.constant 0 : i32
    return %c0_i32, %c0_i32_0 : i32, i32
  }
  func.func @transform_6(%arg0: i32) -> (i32, i32) {
    %c0_i32 = arith.constant 0 : i32
    %c0_i32_0 = arith.constant 0 : i32
    %c0_i32_1 = arith.constant 0 : i32
    return %c0_i32, %c0_i32_0 : i32, i32
  }
}

module attributes {stable_mosaic.version = 11 : i64} {
  func.func @_decoder_kernel(%arg0: i32, %arg1: memref<32x128xbf16, #tpu.memory_space<vmem>>, %arg2: memref<128x128xbf16, #tpu.memory_space<vmem>>, %arg3: memref<1x128xf32, #tpu.memory_space<vmem>>, %arg4: memref<32x128xf32, #tpu.memory_space<vmem>>) attributes {dimension_semantics = [#tpu.dimension_semantics<parallel>], iteration_bounds = array<i64: 2>, scalar_prefetch = 0 : i64, scratch_operands = 0 : i64, tpu.core_type = #tpu.core_type<tc>, window_params = [{transform_indices = @transform_0, window_bounds = array<i64: 32, 128>}, {pipeline_mode = #tpu.pipeline_mode<synchronous>, transform_indices = @transform_1, window_bounds = array<i64: 128, 128>}, {pipeline_mode = #tpu.pipeline_mode<synchronous>, transform_indices = @transform_2, window_bounds = array<i64: 1, 128>}, {transform_indices = @transform_3, window_bounds = array<i64: 32, 128>}]} {
    %c0 = arith.constant 0 : index
    %c0_0 = arith.constant 0 : index
    %0 = vector.load %arg1[%c0, %c0_0] : memref<32x128xbf16, #tpu.memory_space<vmem>>, vector<32x128xbf16>
    %c0_1 = arith.constant 0 : index
    %c0_2 = arith.constant 0 : index
    %1 = vector.load %arg2[%c0_1, %c0_2] : memref<128x128xbf16, #tpu.memory_space<vmem>>, vector<128x128xbf16>
    %cst = arith.constant dense<0.000000e+00> : vector<32x128xf32>
    %2 = tpu.matmul %0, %1, %cst {dimension_numbers = #tpu.dot_dimension_numbers<[1], [0], [0], [1], [0, 0, 1, 1], [], []>} : vector<32x128xbf16>, vector<128x128xbf16>, vector<32x128xf32> -> vector<32x128xf32>
    %c0_3 = arith.constant 0 : index
    %c0_4 = arith.constant 0 : index
    %3 = vector.load %arg3[%c0_3, %c0_4] : memref<1x128xf32, #tpu.memory_space<vmem>>, vector<1x128xf32>
    %4 = vector.broadcast %3 : vector<1x128xf32> to vector<32x128xf32>
    %5 = arith.addf %2, %4 : vector<32x128xf32>
    %cst_5 = arith.constant dense<0xFF800000> : vector<32xf32>
    %6 = vector.multi_reduction <maximumf>, %5, %cst_5 [1] : vector<32x128xf32> to vector<32xf32>
    %7 = vector.shape_cast %6 : vector<32xf32> to vector<32x1xf32>
    %8 = vector.broadcast %7 : vector<32x1xf32> to vector<32x128xf32>
    %9 = arith.subf %5, %8 : vector<32x128xf32>
    %10 = math.exp %9 : vector<32x128xf32>
    %cst_6 = arith.constant dense<0.000000e+00> : vector<32xf32>
    %11 = vector.multi_reduction <add>, %10, %cst_6 [1] : vector<32x128xf32> to vector<32xf32>
    %12 = vector.shape_cast %11 : vector<32xf32> to vector<32x1xf32>
    %13 = math.log %12 : vector<32x1xf32>
    %14 = vector.broadcast %13 : vector<32x1xf32> to vector<32x128xf32>
    %15 = arith.subf %9, %14 : vector<32x128xf32>
    %c0_7 = arith.constant 0 : index
    %c0_8 = arith.constant 0 : index
    %16 = vector.load %arg4[%c0_7, %c0_8] : memref<32x128xf32, #tpu.memory_space<vmem>>, vector<32x128xf32>
    tpu.vector_store %arg4[%c0_7, %c0_8], %15 {strides = array<i32>} : memref<32x128xf32, #tpu.memory_space<vmem>>, vector<32x128xf32>,
    return
  }
  func.func @transform_0(%arg0: i32) -> (i32, i32) {
    %c0_i32 = arith.constant 0 : i32
    %c0_i32_0 = arith.constant 0 : i32
    return %arg0, %c0_i32 : i32, i32
  }
  func.func @transform_1(%arg0: i32) -> (i32, i32) {
    %c0_i32 = arith.constant 0 : i32
    %c0_i32_0 = arith.constant 0 : i32
    %c0_i32_1 = arith.constant 0 : i32
    return %c0_i32, %c0_i32_0 : i32, i32
  }
  func.func @transform_2(%arg0: i32) -> (i32, i32) {
    %c0_i32 = arith.constant 0 : i32
    %c0_i32_0 = arith.constant 0 : i32
    %c0_i32_1 = arith.constant 0 : i32
    return %c0_i32, %c0_i32_0 : i32, i32
  }
  func.func @transform_3(%arg0: i32) -> (i32, i32) {
    %c0_i32 = arith.constant 0 : i32
    %c0_i32_0 = arith.constant 0 : i32
    return %arg0, %c0_i32 : i32, i32
  }
}

module attributes {stable_mosaic.version = 11 : i64} {
  func.func @_decoder_kernel(%arg0: i32, %arg1: memref<32x128xbf16, #tpu.memory_space<vmem>>, %arg2: memref<128x128xbf16, #tpu.memory_space<vmem>>, %arg3: memref<1x128xf32, #tpu.memory_space<vmem>>, %arg4: memref<32x128xf32, #tpu.memory_space<vmem>>) attributes {dimension_semantics = [#tpu.dimension_semantics<parallel>], iteration_bounds = array<i64: 2>, scalar_prefetch = 0 : i64, scratch_operands = 0 : i64, tpu.core_type = #tpu.core_type<tc>, window_params = [{transform_indices = @transform_0, window_bounds = array<i64: 32, 128>}, {pipeline_mode = #tpu.pipeline_mode<synchronous>, transform_indices = @transform_1, window_bounds = array<i64: 128, 128>}, {pipeline_mode = #tpu.pipeline_mode<synchronous>, transform_indices = @transform_2, window_bounds = array<i64: 1, 128>}, {transform_indices = @transform_3, window_bounds = array<i64: 32, 128>}]} {
    %c0 = arith.constant 0 : index
    %c0_0 = arith.constant 0 : index
    %0 = vector.load %arg1[%c0, %c0_0] : memref<32x128xbf16, #tpu.memory_space<vmem>>, vector<32x128xbf16>
    %c0_1 = arith.constant 0 : index
    %c0_2 = arith.constant 0 : index
    %1 = vector.load %arg2[%c0_1, %c0_2] : memref<128x128xbf16, #tpu.memory_space<vmem>>, vector<128x128xbf16>
    %cst = arith.constant dense<0.000000e+00> : vector<32x128xf32>
    %2 = tpu.matmul %0, %1, %cst {dimension_numbers = #tpu.dot_dimension_numbers<[1], [0], [0], [1], [0, 0, 1, 1], [], []>} : vector<32x128xbf16>, vector<128x128xbf16>, vector<32x128xf32> -> vector<32x128xf32>
    %c0_3 = arith.constant 0 : index
    %c0_4 = arith.constant 0 : index
    %3 = vector.load %arg3[%c0_3, %c0_4] : memref<1x128xf32, #tpu.memory_space<vmem>>, vector<1x128xf32>
    %4 = vector.broadcast %3 : vector<1x128xf32> to vector<32x128xf32>
    %5 = arith.addf %2, %4 : vector<32x128xf32>
    %cst_5 = arith.constant dense<0xFF800000> : vector<32xf32>
    %6 = vector.multi_reduction <maximumf>, %5, %cst_5 [1] : vector<32x128xf32> to vector<32xf32>
    %7 = vector.shape_cast %6 : vector<32xf32> to vector<32x1xf32>
    %8 = vector.broadcast %7 : vector<32x1xf32> to vector<32x128xf32>
    %9 = arith.subf %5, %8 : vector<32x128xf32>
    %10 = math.exp %9 : vector<32x128xf32>
    %cst_6 = arith.constant dense<0.000000e+00> : vector<32xf32>
    %11 = vector.multi_reduction <add>, %10, %cst_6 [1] : vector<32x128xf32> to vector<32xf32>
    %12 = vector.shape_cast %11 : vector<32xf32> to vector<32x1xf32>
    %13 = math.log %12 : vector<32x1xf32>
    %14 = vector.broadcast %13 : vector<32x1xf32> to vector<32x128xf32>
    %15 = arith.subf %9, %14 : vector<32x128xf32>
    %c0_7 = arith.constant 0 : index
    %c0_8 = arith.constant 0 : index
    %16 = vector.load %arg4[%c0_7, %c0_8] : memref<32x128xf32, #tpu.memory_space<vmem>>, vector<32x128xf32>
    tpu.vector_store %arg4[%c0_7, %c0_8], %15 {strides = array<i32>} : memref<32x128xf32, #tpu.memory_space<vmem>>, vector<32x128xf32>,
    return
  }
  func.func @transform_0(%arg0: i32) -> (i32, i32) {
    %c0_i32 = arith.constant 0 : i32
    %c0_i32_0 = arith.constant 0 : i32
    return %arg0, %c0_i32 : i32, i32
  }
  func.func @transform_1(%arg0: i32) -> (i32, i32) {
    %c0_i32 = arith.constant 0 : i32
    %c0_i32_0 = arith.constant 0 : i32
    %c0_i32_1 = arith.constant 0 : i32
    return %c0_i32, %c0_i32_0 : i32, i32
  }
  func.func @transform_2(%arg0: i32) -> (i32, i32) {
    %c0_i32 = arith.constant 0 : i32
    %c0_i32_0 = arith.constant 0 : i32
    %c0_i32_1 = arith.constant 0 : i32
    return %c0_i32, %c0_i32_0 : i32, i32
  }
  func.func @transform_3(%arg0: i32) -> (i32, i32) {
    %c0_i32 = arith.constant 0 : i32
    %c0_i32_0 = arith.constant 0 : i32
    return %arg0, %c0_i32 : i32, i32
  }
}

module attributes {stable_mosaic.version = 11 : i64} {
  func.func @_lstm_step_kernel(%arg0: i32, %arg1: memref<1x8x512xf32, #tpu.memory_space<vmem>>, %arg2: memref<8x128xf32, #tpu.memory_space<vmem>>, %arg3: memref<8x128xf32, #tpu.memory_space<vmem>>, %arg4: memref<128x512xbf16, #tpu.memory_space<vmem>>, %arg5: memref<1x8x128xbf16, #tpu.memory_space<vmem>>, %arg6: memref<8x128xf32, #tpu.memory_space<vmem>>, %arg7: memref<8x128xf32, #tpu.memory_space<vmem>>) attributes {dimension_semantics = [#tpu.dimension_semantics<arbitrary>], iteration_bounds = array<i64: 8>, scalar_prefetch = 0 : i64, scratch_operands = 0 : i64, tpu.core_type = #tpu.core_type<tc>, window_params = [{transform_indices = @transform_0, window_bounds = array<i64: 1, 8, 512>}, {pipeline_mode = #tpu.pipeline_mode<synchronous>, transform_indices = @transform_1, window_bounds = array<i64: 8, 128>}, {pipeline_mode = #tpu.pipeline_mode<synchronous>, transform_indices = @transform_2, window_bounds = array<i64: 8, 128>}, {pipeline_mode = #tpu.pipeline_mode<synchronous>, transform_indices = @transform_3, window_bounds = array<i64: 128, 512>}, {transform_indices = @transform_4, window_bounds = array<i64: 1, 8, 128>}, {pipeline_mode = #tpu.pipeline_mode<synchronous>, transform_indices = @transform_5, window_bounds = array<i64: 8, 128>}, {pipeline_mode = #tpu.pipeline_mode<synchronous>, transform_indices = @transform_6, window_bounds = array<i64: 8, 128>}]} {
    %c0_i32 = arith.constant 0 : i32
    %0 = arith.cmpi eq, %arg0, %c0_i32 : i32
    %1 = arith.extui %0 : i1 to i32
    %c0_i32_0 = arith.constant 0 : i32
    %2 = arith.cmpi ne, %1, %c0_i32_0 : i32
    scf.if %2 {
      %c0_19 = arith.constant 0 : index
      %c0_20 = arith.constant 0 : index
      %42 = vector.load %arg2[%c0_19, %c0_20] : memref<8x128xf32, #tpu.memory_space<vmem>>, vector<8x128xf32>
      %c0_21 = arith.constant 0 : index
      %c0_22 = arith.constant 0 : index
      %43 = vector.load %arg6[%c0_21, %c0_22] : memref<8x128xf32, #tpu.memory_space<vmem>>, vector<8x128xf32>
      tpu.vector_store %arg6[%c0_21, %c0_22], %42 {strides = array<i32>} : memref<8x128xf32, #tpu.memory_space<vmem>>, vector<8x128xf32>,
      %c0_23 = arith.constant 0 : index
      %c0_24 = arith.constant 0 : index
      %44 = vector.load %arg3[%c0_23, %c0_24] : memref<8x128xf32, #tpu.memory_space<vmem>>, vector<8x128xf32>
      %c0_25 = arith.constant 0 : index
      %c0_26 = arith.constant 0 : index
      %45 = vector.load %arg7[%c0_25, %c0_26] : memref<8x128xf32, #tpu.memory_space<vmem>>, vector<8x128xf32>
      tpu.vector_store %arg7[%c0_25, %c0_26], %44 {strides = array<i32>} : memref<8x128xf32, #tpu.memory_space<vmem>>, vector<8x128xf32>,
    } else {
    }
    %c0 = arith.constant 0 : index
    %c0_1 = arith.constant 0 : index
    %3 = vector.load %arg6[%c0, %c0_1] : memref<8x128xf32, #tpu.memory_space<vmem>>, vector<8x128xf32>
    %c0_2 = arith.constant 0 : index
    %c0_3 = arith.constant 0 : index
    %4 = vector.load %arg7[%c0_2, %c0_3] : memref<8x128xf32, #tpu.memory_space<vmem>>, vector<8x128xf32>
    %c0_4 = arith.constant 0 : index
    %c0_5 = arith.constant 0 : index
    %c0_6 = arith.constant 0 : index
    %5 = vector.load %arg1[%c0_4, %c0_5, %c0_6] : memref<1x8x512xf32, #tpu.memory_space<vmem>>, vector<1x8x512xf32>
    %6 = vector.shape_cast %5 : vector<1x8x512xf32> to vector<8x512xf32>
    %7 = arith.truncf %3 : vector<8x128xf32> to vector<8x128xbf16>
    %c0_7 = arith.constant 0 : index
    %c0_8 = arith.constant 0 : index
    %8 = vector.load %arg4[%c0_7, %c0_8] : memref<128x512xbf16, #tpu.memory_space<vmem>>, vector<128x512xbf16>
    %cst = arith.constant dense<0.000000e+00> : vector<8x512xf32>
    %9 = tpu.matmul %7, %8, %cst {dimension_numbers = #tpu.dot_dimension_numbers<[1], [0], [0], [1], [0, 0, 1, 1], [], []>} : vector<8x128xbf16>, vector<128x512xbf16>, vector<8x512xf32> -> vector<8x512xf32>
    %10 = arith.addf %6, %9 : vector<8x512xf32>
    %11 = vector.extract_strided_slice %10 {offsets = [0, 0], sizes = [8, 128], strides = [1, 1]} : vector<8x512xf32> to vector<8x128xf32>
    %12 = arith.negf %11 : vector<8x128xf32>
    %13 = math.exp %12 : vector<8x128xf32>
    %cst_9 = arith.constant 1.000000e+00 : f32
    %14 = vector.broadcast %cst_9 : f32 to vector<8x128xf32>
    %15 = arith.addf %14, %13 : vector<8x128xf32>
    %16 = arith.divf %14, %15 : vector<8x128xf32>
    %17 = vector.extract_strided_slice %10 {offsets = [0, 128], sizes = [8, 128], strides = [1, 1]} : vector<8x512xf32> to vector<8x128xf32>
    %18 = arith.negf %17 : vector<8x128xf32>
    %19 = math.exp %18 : vector<8x128xf32>
    %cst_10 = arith.constant 1.000000e+00 : f32
    %20 = vector.broadcast %cst_10 : f32 to vector<8x128xf32>
    %21 = arith.addf %20, %19 : vector<8x128xf32>
    %22 = arith.divf %20, %21 : vector<8x128xf32>
    %23 = vector.extract_strided_slice %10 {offsets = [0, 256], sizes = [8, 128], strides = [1, 1]} : vector<8x512xf32> to vector<8x128xf32>
    %24 = math.tanh %23 : vector<8x128xf32>
    %25 = vector.extract_strided_slice %10 {offsets = [0, 384], sizes = [8, 128], strides = [1, 1]} : vector<8x512xf32> to vector<8x128xf32>
    %26 = arith.negf %25 : vector<8x128xf32>
    %27 = math.exp %26 : vector<8x128xf32>
    %cst_11 = arith.constant 1.000000e+00 : f32
    %28 = vector.broadcast %cst_11 : f32 to vector<8x128xf32>
    %29 = arith.addf %28, %27 : vector<8x128xf32>
    %30 = arith.divf %28, %29 : vector<8x128xf32>
    %31 = arith.mulf %22, %4 : vector<8x128xf32>
    %32 = arith.mulf %16, %24 : vector<8x128xf32>
    %33 = arith.addf %31, %32 : vector<8x128xf32>
    %34 = math.tanh %33 : vector<8x128xf32>
    %35 = arith.mulf %30, %34 : vector<8x128xf32>
    %36 = arith.truncf %35 : vector<8x128xf32> to vector<8x128xbf16>
    %c0_12 = arith.constant 0 : index
    %c0_13 = arith.constant 0 : index
    %c0_14 = arith.constant 0 : index
    %37 = vector.load %arg5[%c0_12, %c0_13, %c0_14] : memref<1x8x128xbf16, #tpu.memory_space<vmem>>, vector<1x8x128xbf16>
    %38 = vector.shape_cast %37 : vector<1x8x128xbf16> to vector<8x128xbf16>
    %39 = vector.shape_cast %36 : vector<8x128xbf16> to vector<1x8x128xbf16>
    tpu.vector_store %arg5[%c0_12, %c0_13, %c0_14], %39 {strides = array<i32>} : memref<1x8x128xbf16, #tpu.memory_space<vmem>>, vector<1x8x128xbf16>,
    %c0_15 = arith.constant 0 : index
    %c0_16 = arith.constant 0 : index
    %40 = vector.load %arg6[%c0_15, %c0_16] : memref<8x128xf32, #tpu.memory_space<vmem>>, vector<8x128xf32>
    tpu.vector_store %arg6[%c0_15, %c0_16], %35 {strides = array<i32>} : memref<8x128xf32, #tpu.memory_space<vmem>>, vector<8x128xf32>,
    %c0_17 = arith.constant 0 : index
    %c0_18 = arith.constant 0 : index
    %41 = vector.load %arg7[%c0_17, %c0_18] : memref<8x128xf32, #tpu.memory_space<vmem>>, vector<8x128xf32>
    tpu.vector_store %arg7[%c0_17, %c0_18], %33 {strides = array<i32>} : memref<8x128xf32, #tpu.memory_space<vmem>>, vector<8x128xf32>,
    return
  }
  func.func @transform_0(%arg0: i32) -> (i32, i32, i32) {
    %c0_i32 = arith.constant 0 : i32
    %c0_i32_0 = arith.constant 0 : i32
    %c0_i32_1 = arith.constant 0 : i32
    return %arg0, %c0_i32, %c0_i32_0 : i32, i32, i32
  }
  func.func @transform_1(%arg0: i32) -> (i32, i32) {
    %c0_i32 = arith.constant 0 : i32
    %c0_i32_0 = arith.constant 0 : i32
    %c0_i32_1 = arith.constant 0 : i32
    return %c0_i32, %c0_i32_0 : i32, i32
  }
  func.func @transform_2(%arg0: i32) -> (i32, i32) {
    %c0_i32 = arith.constant 0 : i32
    %c0_i32_0 = arith.constant 0 : i32
    %c0_i32_1 = arith.constant 0 : i32
    return %c0_i32, %c0_i32_0 : i32, i32
  }
  func.func @transform_3(%arg0: i32) -> (i32, i32) {
    %c0_i32 = arith.constant 0 : i32
    %c0_i32_0 = arith.constant 0 : i32
    %c0_i32_1 = arith.constant 0 : i32
    return %c0_i32, %c0_i32_0 : i32, i32
  }
  func.func @transform_4(%arg0: i32) -> (i32, i32, i32) {
    %c0_i32 = arith.constant 0 : i32
    %c0_i32_0 = arith.constant 0 : i32
    %c0_i32_1 = arith.constant 0 : i32
    return %arg0, %c0_i32, %c0_i32_0 : i32, i32, i32
  }
  func.func @transform_5(%arg0: i32) -> (i32, i32) {
    %c0_i32 = arith.constant 0 : i32
    %c0_i32_0 = arith.constant 0 : i32
    %c0_i32_1 = arith.constant 0 : i32
    return %c0_i32, %c0_i32_0 : i32, i32
  }
  func.func @transform_6(%arg0: i32) -> (i32, i32) {
    %c0_i32 = arith.constant 0 : i32
    %c0_i32_0 = arith.constant 0 : i32
    %c0_i32_1 = arith.constant 0 : i32
    return %c0_i32, %c0_i32_0 : i32, i32
  }
}

</mosaic_0001>

<llo_original>
// kernel: language_model_forward.2
$region0: #{language_model_forward.2}
  #allocation0 [shape = 'u32[]', space=smem, size = 0x4, offset = 0x4, fixed_abs, tag = 'smem constant byte address 0x4 - core index']
  #allocation1 [shape = 'u32[144,128]{1,0:T(1,128)}', space=vmem, size = 0x12000, scoped, tag = 'internal scratch']
  %s0 = inlined_call_operand.vmem [shape: f32[8,8,512], index: 0, kind: input, shape index: {}]
  %s1 = inlined_call_operand.vmem [shape: f32[8,128], index: 1, kind: input, shape index: {}]
  %s2 = inlined_call_operand.vmem [shape: f32[8,128], index: 2, kind: input, shape index: {}]
  %s3 = inlined_call_operand.vmem [shape: bf16[128,512], index: 3, kind: input, shape index: {}]
  %s4 = inlined_call_operand.vmem [shape: bf16[8,8,128], index: 4, kind: output, shape index: {0}]
  %s5 = inlined_call_operand.vmem [shape: f32[8,128], index: 5, kind: output, shape index: {1}]
  %s6 = inlined_call_operand.vmem [shape: f32[8,128], index: 6, kind: output, shape index: {2}]
  %7 = xla_tuple %s4, %s5, %s6
  %s8 = sld [smem:[#allocation0]]
  $region69: #{language_model_forward.2} parent=0
    _
  %s10 = ssub.s32 1, %s8
  %s11 = scalar_select 0, %s10, %s8
  loop: start=0, step=1, limit=10
  $region2: #{language_model_forward.2} parent=0 // loop_pre_header
    _
  $region3: #{language_model_forward.2} parent=0 // loop_header
    %s13 = sphi 0, %s17
    %p14 = scmp.ge.s32.totalorder %s13, 10
    %s23 = sphi 0, %s25
    %s26 = sphi 0, %s23
    %s27 = sphi 0, %s26
    %s43 = sphi 0, %s27
    %s47 = sphi 0, %s47
    %s49 = sphi 0, %s47
    %s50 = sphi 0, %s49
    %s64 = sphi 0, %s50
    %s68 = sphi 0, %s68
    %s70 = sphi 0, %s68
    %s71 = sphi 0, %s70
    %s85 = sphi 0, %s71
    %s89 = sphi 0, %s89
    %s91 = sphi 0, %s89
    %s92 = sphi 0, %s91
    %s106 = sphi 0, %s92
    %s112 = sphi 0, %s114
    %s115 = sphi 0, %s112
    %s116 = sphi 0, %s115
    %s132 = sphi 0, %s116
    %s136 = sphi 0, %s136
    %s138 = sphi 0, %s136
    %s139 = sphi 0, %s138
    %s153 = sphi 0, %s139
    %s157 = sphi 0, %s157
    %s159 = sphi 0, %s157
    %s160 = sphi 0, %s159
    %s174 = sphi 0, %s160
  $region4: #{language_model_forward.2} parent=0 // loop_header_branch
    %16 = sbr.rel (%p14) target = $region8
  $region5: #{language_model_forward.2} parent=0 // loop_body
    %s18 = ssub.s32 %s13, 1
    %s19 = ssub.s32 %s13, 2
    %s20 = sadd.s32 %s13, 1
    %s21 = ssub.s32 %s13, %s20
    %p22 = scmp.eq.s32.totalorder %s21, 0
    %s24 = sadd.s32 %s23, 1
    %s25 = scalar_select %p22, %s23, %s24
    %p28 = pneg %p22
    %p29 = scmp.eq.s32.totalorder %s13, 7
    %p30 = por %p28, %p29
    %p31 = scmp.ne.s32.totalorder %s23, %s26
    %p32 = scmp.eq.s32.totalorder %s13, 0
    %p33 = por %p31, %p32
    %p34 = scmp.ne.s32.totalorder %s23, %s26
    %p35 = scmp.eq.s32.totalorder %s18, 7
    %p36 = por %p34, %p35
    %p37 = scmp.ne.s32.totalorder %s26, %s27
    %p38 = scmp.eq.s32.totalorder %s18, 0
    %p39 = por %p37, %p38
    %p40 = scmp.ne.s32.totalorder %s26, %s27
    %p41 = scmp.eq.s32.totalorder %s19, 7
    %p42 = por %p40, %p41
    %p44 = scmp.ne.s32.totalorder %s27, %s43
    %p45 = scmp.eq.s32.totalorder %s19, 0
    %p46 = por %p44, %p45
    %s48 = sadd.s32 %s47, 1
    %p51 = scmp.eq.s32.totalorder %s13, 7
    %p52 = scmp.ne.s32.totalorder %s47, %s49
    %p53 = scmp.eq.s32.totalorder %s13, 0
    %p54 = por %p52, %p53
    %p55 = scmp.ne.s32.totalorder %s47, %s49
    %p56 = scmp.eq.s32.totalorder %s18, 7
    %p57 = por %p55, %p56
    %p58 = scmp.ne.s32.totalorder %s49, %s50
    %p59 = scmp.eq.s32.totalorder %s18, 0
    %p60 = por %p58, %p59
    %p61 = scmp.ne.s32.totalorder %s49, %s50
    %p62 = scmp.eq.s32.totalorder %s19, 7
    %p63 = por %p61, %p62
    %p65 = scmp.ne.s32.totalorder %s50, %s64
    %p66 = scmp.eq.s32.totalorder %s19, 0
    %p67 = por %p65, %p66
    %s69 = sadd.s32 %s68, 1
    %p72 = scmp.eq.s32.totalorder %s13, 7
    %p73 = scmp.ne.s32.totalorder %s68, %s70
    %p74 = scmp.eq.s32.totalorder %s13, 0
    %p75 = por %p73, %p74
    %p76 = scmp.ne.s32.totalorder %s68, %s70
    %p77 = scmp.eq.s32.totalorder %s18, 7
    %p78 = por %p76, %p77
    %p79 = scmp.ne.s32.totalorder %s70, %s71
    %p80 = scmp.eq.s32.totalorder %s18, 0
    %p81 = por %p79, %p80
    %p82 = scmp.ne.s32.totalorder %s70, %s71
    %p83 = scmp.eq.s32.totalorder %s19, 7
    %p84 = por %p82, %p83
    %p86 = scmp.ne.s32.totalorder %s71, %s85
    %p87 = scmp.eq.s32.totalorder %s19, 0
    %p88 = por %p86, %p87
    %s90 = sadd.s32 %s89, 1
    %p93 = scmp.eq.s32.totalorder %s13, 7
    %p94 = scmp.ne.s32.totalorder %s89, %s91
    %p95 = scmp.eq.s32.totalorder %s13, 0
    %p96 = por %p94, %p95
    %p97 = scmp.ne.s32.totalorder %s89, %s91
    %p98 = scmp.eq.s32.totalorder %s18, 7
    %p99 = por %p97, %p98
    %p100 = scmp.ne.s32.totalorder %s91, %s92
    %p101 = scmp.eq.s32.totalorder %s18, 0
    %p102 = por %p100, %p101
    %p103 = scmp.ne.s32.totalorder %s91, %s92
    %p104 = scmp.eq.s32.totalorder %s19, 7
    %p105 = por %p103, %p104
    %p107 = scmp.ne.s32.totalorder %s92, %s106
    %p108 = scmp.eq.s32.totalorder %s19, 0
    %p109 = por %p107, %p108
    %s110 = ssub.s32 %s13, %s20
    %p111 = scmp.eq.s32.totalorder %s110, 0
    %s113 = sadd.s32 %s112, 1
    %s114 = scalar_select %p111, %s112, %s113
    %p117 = pneg %p111
    %p118 = scmp.eq.s32.totalorder %s13, 7
    %p119 = por %p117, %p118
    %p120 = scmp.ne.s32.totalorder %s112, %s115
    %p121 = scmp.eq.s32.totalorder %s13, 0
    %p122 = por %p120, %p121
    %p123 = scmp.ne.s32.totalorder %s112, %s115
    %p124 = scmp.eq.s32.totalorder %s18, 7
    %p125 = por %p123, %p124
    %p126 = scmp.ne.s32.totalorder %s115, %s116
    %p127 = scmp.eq.s32.totalorder %s18, 0
    %p128 = por %p126, %p127
    %p129 = scmp.ne.s32.totalorder %s115, %s116
    %p130 = scmp.eq.s32.totalorder %s19, 7
    %p131 = por %p129, %p130
    %p133 = scmp.ne.s32.totalorder %s116, %s132
    %p134 = scmp.eq.s32.totalorder %s19, 0
    %p135 = por %p133, %p134
    %s137 = sadd.s32 %s136, 1
    %p140 = scmp.eq.s32.totalorder %s13, 7
    %p141 = scmp.ne.s32.totalorder %s136, %s138
    %p142 = scmp.eq.s32.totalorder %s13, 0
    %p143 = por %p141, %p142
    %p144 = scmp.ne.s32.totalorder %s136, %s138
    %p145 = scmp.eq.s32.totalorder %s18, 7
    %p146 = por %p144, %p145
    %p147 = scmp.ne.s32.totalorder %s138, %s139
    %p148 = scmp.eq.s32.totalorder %s18, 0
    %p149 = por %p147, %p148
    %p150 = scmp.ne.s32.totalorder %s138, %s139
    %p151 = scmp.eq.s32.totalorder %s19, 7
    %p152 = por %p150, %p151
    %p154 = scmp.ne.s32.totalorder %s139, %s153
    %p155 = scmp.eq.s32.totalorder %s19, 0
    %p156 = por %p154, %p155
    %s158 = sadd.s32 %s157, 1
    %p161 = scmp.eq.s32.totalorder %s13, 7
    %p162 = scmp.ne.s32.totalorder %s157, %s159
    %p163 = scmp.eq.s32.totalorder %s13, 0
    %p164 = por %p162, %p163
    %p165 = scmp.ne.s32.totalorder %s157, %s159
    %p166 = scmp.eq.s32.totalorder %s18, 7
    %p167 = por %p165, %p166
    %p168 = scmp.ne.s32.totalorder %s159, %s160
    %p169 = scmp.eq.s32.totalorder %s18, 0
    %p170 = por %p168, %p169
    %p171 = scmp.ne.s32.totalorder %s159, %s160
    %p172 = scmp.eq.s32.totalorder %s19, 7
    %p173 = por %p171, %p172
    %p175 = scmp.ne.s32.totalorder %s160, %s174
    %p176 = scmp.eq.s32.totalorder %s19, 0
    %p177 = por %p175, %p176
    %p178 = scmp.le.s32.totalorder 1, %s13
    %p179 = scmp.lt.s32.totalorder %s13, 9
    %p180 = pnand %p178, %p179
    %p181 = pneg %p180
    // Predicated region
    $region9: #{language_model_forward.2} parent=5 // pred_check
      _
    $region10: #{language_model_forward.2} parent=5 // pred_check_branch
      %183 = sbr.rel (%p180) target = $region12
    $region11: #{language_model_forward.2} parent=5 // pred_region
      %s184 = ssub.s32 %s13, 1
      // Predicated region
      $region13: #{language_model_forward.2} parent=11 // pred_check
        %p185 = pneg %p60
      $region14: #{language_model_forward.2} parent=11 // pred_check_branch
        %187 = sbr.rel (%p185) target = $region16
      $region15: #{language_model_forward.2} parent=11 // pred_region
        _
      $region16: #{language_model_forward.2} parent=11 // pred_fallthru
        _
      // Predicated region
      $region17: #{language_model_forward.2} parent=11 // pred_check
        %p188 = pneg %p81
      $region18: #{language_model_forward.2} parent=11 // pred_check_branch
        %190 = sbr.rel (%p188) target = $region20
      $region19: #{language_model_forward.2} parent=11 // pred_region
        _
      $region20: #{language_model_forward.2} parent=11 // pred_fallthru
        _
      // Predicated region
      $region21: #{language_model_forward.2} parent=11 // pred_check
        %p191 = pneg %p102
      $region22: #{language_model_forward.2} parent=11 // pred_check_branch
        %193 = sbr.rel (%p191) target = $region24
      $region23: #{language_model_forward.2} parent=11 // pred_region
        _
      $region24: #{language_model_forward.2} parent=11 // pred_fallthru
        _
    $region12: #{language_model_forward.2} parent=5 // pred_fallthru
      _
    %p194 = scmp.lt.s32.totalorder %s13, 8
    // Predicated region
    $region25: #{language_model_forward.2} parent=5 // pred_check
      %p195 = pneg %p194
    $region26: #{language_model_forward.2} parent=5 // pred_check_branch
      %197 = sbr.rel (%p195) target = $region28
    $region27: #{language_model_forward.2} parent=5 // pred_region
      // Predicated region
      $region29: #{language_model_forward.2} parent=27 // pred_check
        %p198 = pneg %p33
      $region30: #{language_model_forward.2} parent=27 // pred_check_branch
        %200 = sbr.rel (%p198) target = $region32
      $region31: #{language_model_forward.2} parent=27 // pred_region
        %p201 = scmp.lt.s32.totalorder %s13, 7
        %s202 = scalar_select %p201, %s13, 7
        %s203 = smul.addr %s202, 4
        %s204 = smul.addr %s203, 8
        %s205 = scalar_lea.vmem %s0, %s204
      $region32: #{language_model_forward.2} parent=27 // pred_fallthru
        _
    $region28: #{language_model_forward.2} parent=5 // pred_fallthru
      _
    %p206 = scmp.le.s32.totalorder 1, %s13
    %p207 = scmp.lt.s32.totalorder %s13, 9
    %p208 = pnand %p206, %p207
    %p209 = pneg %p208
    // Predicated region
    $region33: #{language_model_forward.2} parent=5 // pred_check
      _
    $region34: #{language_model_forward.2} parent=5 // pred_check_branch
      %211 = sbr.rel (%p208) target = $region36
    $region35: #{language_model_forward.2} parent=5 // pred_region
      %s212 = ssub.s32 %s13, 1
      %p213 = scmp.lt.s32.totalorder %s18, 7
      %s214 = scalar_select %p213, %s18, 7
      %s215 = smul.addr %s214, 4
      %s216 = smul.addr %s215, 8
      %s217 = scalar_lea.vmem %s0, %s216
      %p218 = pneg %p39
      %p219 = pneg %p36
      %p220 = pneg %p60
      %p221 = pneg %p57
      %p222 = pneg %p81
      %p223 = pneg %p78
      %p224 = pneg %p102
      %p225 = pneg %p99
      %p226 = pneg %p128
      %p227 = pneg %p125
      %p228 = scmp.lt.s32.totalorder %s18, 7
      %s229 = scalar_select %p228, %s18, 7
      %s230 = smul.addr %s229, 4
      %s231 = scalar_lea.vmem %s4, %s230
      %p232 = pneg %p149
      %p233 = pneg %p146
      %p234 = pneg %p170
      %p235 = pneg %p167
      %p236 = scmp.lt.s32.totalorder %s18, 7
      %s237 = scalar_select %p236, %s18, 7
      %s238 = smul.addr %s237, 4
      %s239 = smul.addr %s238, 8
      %s240 = scalar_lea.vmem %s0, %s239
      %p241 = scmp.lt.s32.totalorder %s18, 7
      %s242 = scalar_select %p241, %s18, 7
      %s243 = smul.addr %s242, 4
      %s244 = scalar_lea.vmem %s4, %s243
      %p246 = scmp.eq.s32.totalorder %s18, 0
      // Predicated region
      $region37: #{language_model_forward.2} parent=35 // pred_check
        %p247 = pneg %p246
      $region38: #{language_model_forward.2} parent=35 // pred_check_branch
        %249 = sbr.rel (%p247) target = $region40
      $region39: #{language_model_forward.2} parent=35 // pred_region
        %v250 = vld [vmem:[%s1] sm:$0xff]
        %251 = vst [vmem:[%s5] sm:$0xff] %v250
        %v252 = vld [vmem:[%s2] sm:$0xff]
        %253 = vst [vmem:[%s6] sm:$0xff] %v252
      $region40: #{language_model_forward.2} parent=35 // pred_fallthru
        _
      %v254 = vld [vmem:[%s5] sm:$0xff]
      %v255 = vld [vmem:[%s6] sm:$0xff]
      %v256 = vld [vmem:[%s240] sm:$0xff]
      %v257 = vld [vmem:[%s240 + $0x8] sm:$0xff]
      %v258 = vld [vmem:[%s240 + $0x10] sm:$0xff]
      %v259 = vld [vmem:[%s240 + $0x18] sm:$0xff]
      %v260 = vpack.c.bf16 %v254, %v254
      %v261 = vld [vmem:[%s3] sm:$0xff]
      %v262 = vld [vmem:[%s3 + $0x8] sm:$0xff]
      %v263 = vld [vmem:[%s3 + $0x10] sm:$0xff]
      %v264 = vld [vmem:[%s3 + $0x18] sm:$0xff]
      %v265 = vld [vmem:[%s3 + $0x20] sm:$0xff]
      %v266 = vld [vmem:[%s3 + $0x28] sm:$0xff]
      %v267 = vld [vmem:[%s3 + $0x30] sm:$0xff]
      %v268 = vld [vmem:[%s3 + $0x38] sm:$0xff]
      %v269 = vld [vmem:[%s3 + $0x40] sm:$0xff]
      %v270 = vld [vmem:[%s3 + $0x48] sm:$0xff]
      %v271 = vld [vmem:[%s3 + $0x50] sm:$0xff]
      %v272 = vld [vmem:[%s3 + $0x58] sm:$0xff]
      %v273 = vld [vmem:[%s3 + $0x60] sm:$0xff]
      %v274 = vld [vmem:[%s3 + $0x68] sm:$0xff]
      %v275 = vld [vmem:[%s3 + $0x70] sm:$0xff]
      %v276 = vld [vmem:[%s3 + $0x78] sm:$0xff]
      %v277 = vld [vmem:[%s3 + $0x80] sm:$0xff]
      %v278 = vld [vmem:[%s3 + $0x88] sm:$0xff]
      %v279 = vld [vmem:[%s3 + $0x90] sm:$0xff]
      %v280 = vld [vmem:[%s3 + $0x98] sm:$0xff]
      %v281 = vld [vmem:[%s3 + $0xa0] sm:$0xff]
      %v282 = vld [vmem:[%s3 + $0xa8] sm:$0xff]
      %v283 = vld [vmem:[%s3 + $0xb0] sm:$0xff]
      %v284 = vld [vmem:[%s3 + $0xb8] sm:$0xff]
      %v285 = vld [vmem:[%s3 + $0xc0] sm:$0xff]
      %v286 = vld [vmem:[%s3 + $0xc8] sm:$0xff]
      %v287 = vld [vmem:[%s3 + $0xd0] sm:$0xff]
      %v288 = vld [vmem:[%s3 + $0xd8] sm:$0xff]
      %v289 = vld [vmem:[%s3 + $0xe0] sm:$0xff]
      %v290 = vld [vmem:[%s3 + $0xe8] sm:$0xff]
      %v291 = vld [vmem:[%s3 + $0xf0] sm:$0xff]
      %v292 = vld [vmem:[%s3 + $0xf8] sm:$0xff]
      %v325 = vunpack.c.l.b16 %v261
      %v326 = vunpack.c.h.b16 %v261
      %v327 = vunpack.c.l.b16 %v262
      %v328 = vunpack.c.h.b16 %v262
      %v329 = vunpack.c.l.b16 %v263
      %v330 = vunpack.c.h.b16 %v263
      %v331 = vunpack.c.l.b16 %v264
      %v332 = vunpack.c.h.b16 %v264
      %v333 = vunpack.c.l.b16 %v265
      %v334 = vunpack.c.h.b16 %v265
      %v335 = vunpack.c.l.b16 %v266
      %v336 = vunpack.c.h.b16 %v266
      %v337 = vunpack.c.l.b16 %v267
      %v338 = vunpack.c.h.b16 %v267
      %v339 = vunpack.c.l.b16 %v268
      %v340 = vunpack.c.h.b16 %v268
      %v341 = vunpack.c.l.b16 %v269
      %v342 = vunpack.c.h.b16 %v269
      %v343 = vunpack.c.l.b16 %v270
      %v344 = vunpack.c.h.b16 %v270
      %v345 = vunpack.c.l.b16 %v271
      %v346 = vunpack.c.h.b16 %v271
      %v347 = vunpack.c.l.b16 %v272
      %v348 = vunpack.c.h.b16 %v272
      %v349 = vunpack.c.l.b16 %v273
      %v350 = vunpack.c.h.b16 %v273
      %v351 = vunpack.c.l.b16 %v274
      %v352 = vunpack.c.h.b16 %v274
      %v353 = vunpack.c.l.b16 %v275
      %v354 = vunpack.c.h.b16 %v275
      %v355 = vunpack.c.l.b16 %v276
      %v356 = vunpack.c.h.b16 %v276
      %v357 = vunpack.c.l.b16 %v277
      %v358 = vunpack.c.h.b16 %v277
      %v359 = vunpack.c.l.b16 %v278
      %v360 = vunpack.c.h.b16 %v278
      %v361 = vunpack.c.l.b16 %v279
      %v362 = vunpack.c.h.b16 %v279
      %v363 = vunpack.c.l.b16 %v280
      %v364 = vunpack.c.h.b16 %v280
      %v365 = vunpack.c.l.b16 %v281
      %v366 = vunpack.c.h.b16 %v281
      %v367 = vunpack.c.l.b16 %v282
      %v368 = vunpack.c.h.b16 %v282
      %v369 = vunpack.c.l.b16 %v283
      %v370 = vunpack.c.h.b16 %v283
      %v371 = vunpack.c.l.b16 %v284
      %v372 = vunpack.c.h.b16 %v284
      %v373 = vunpack.c.l.b16 %v285
      %v374 = vunpack.c.h.b16 %v285
      %v375 = vunpack.c.l.b16 %v286
      %v376 = vunpack.c.h.b16 %v286
      %v377 = vunpack.c.l.b16 %v287
      %v378 = vunpack.c.h.b16 %v287
      %v379 = vunpack.c.l.b16 %v288
      %v380 = vunpack.c.h.b16 %v288
      %v381 = vunpack.c.l.b16 %v289
      %v382 = vunpack.c.h.b16 %v289
      %v383 = vunpack.c.l.b16 %v290
      %v384 = vunpack.c.h.b16 %v290
      %v385 = vunpack.c.l.b16 %v291
      %v386 = vunpack.c.h.b16 %v291
      %v387 = vunpack.c.l.b16 %v292
      %v388 = vunpack.c.h.b16 %v292
      %v389 = vpack.c.b16 %v329, %v325
      %v390 = vpack.c.b16 %v330, %v326
      %v391 = vpack.c.b16 %v331, %v327
      %v392 = vpack.c.b16 %v332, %v328
      %v393 = vpack.c.b16 %v337, %v333
      %v394 = vpack.c.b16 %v338, %v334
      %v395 = vpack.c.b16 %v339, %v335
      %v396 = vpack.c.b16 %v340, %v336
      %v397 = vpack.c.b16 %v345, %v341
      %v398 = vpack.c.b16 %v346, %v342
      %v399 = vpack.c.b16 %v347, %v343
      %v400 = vpack.c.b16 %v348, %v344
      %v401 = vpack.c.b16 %v353, %v349
      %v402 = vpack.c.b16 %v354, %v350
      %v403 = vpack.c.b16 %v355, %v351
      %v404 = vpack.c.b16 %v356, %v352
      %v405 = vpack.c.b16 %v361, %v357
      %v406 = vpack.c.b16 %v362, %v358
      %v407 = vpack.c.b16 %v363, %v359
      %v408 = vpack.c.b16 %v364, %v360
      %v409 = vpack.c.b16 %v369, %v365
      %v410 = vpack.c.b16 %v370, %v366
      %v411 = vpack.c.b16 %v371, %v367
      %v412 = vpack.c.b16 %v372, %v368
      %v413 = vpack.c.b16 %v377, %v373
      %v414 = vpack.c.b16 %v378, %v374
      %v415 = vpack.c.b16 %v379, %v375
      %v416 = vpack.c.b16 %v380, %v376
      %v417 = vpack.c.b16 %v385, %v381
      %v418 = vpack.c.b16 %v386, %v382
      %v419 = vpack.c.b16 %v387, %v383
      %v420 = vpack.c.b16 %v388, %v384
      %453 = vmatprep.subr.bf16.mxu0 %v390
      %454 = vmatpush1.bf16.msra.mxu0 %v389
      %455 = vmatprep.subr.bf16.mxu0 %v394
      %456 = vmatpush1.bf16.msra.mxu0 %v393
      %457 = vmatprep.subr.bf16.mxu0 %v398
      %458 = vmatpush1.bf16.msra.mxu0 %v397
      %459 = vmatprep.subr.bf16.mxu0 %v402
      %460 = vmatpush1.bf16.msra.mxu0 %v401
      %461 = vmatprep.subr.bf16.mxu0 %v406
      %462 = vmatpush1.bf16.msra.mxu0 %v405
      %463 = vmatprep.subr.bf16.mxu0 %v410
      %464 = vmatpush1.bf16.msra.mxu0 %v409
      %465 = vmatprep.subr.bf16.mxu0 %v414
      %466 = vmatpush1.bf16.msra.mxu0 %v413
      %467 = vmatprep.subr.bf16.mxu0 %v418
      %468 = vmatpush1.bf16.msra.mxu0 %v417
      %469 = vmatprep.subr.bf16.mxu0 0
      %470 = vmatpush1.bf16.msra.mxu0 0
      %471 = vmatprep.subr.bf16.mxu0 0
      %472 = vmatpush1.bf16.msra.mxu0 0
      %473 = vmatprep.subr.bf16.mxu0 0
      %474 = vmatpush1.bf16.msra.mxu0 0
      %475 = vmatprep.subr.bf16.mxu0 0
      %476 = vmatpush1.bf16.msra.mxu0 0
      %477 = vmatprep.subr.bf16.mxu0 0
      %478 = vmatpush1.bf16.msra.mxu0 0
      %479 = vmatprep.subr.bf16.mxu0 0
      %480 = vmatpush1.bf16.msra.mxu0 0
      %481 = vmatprep.subr.bf16.mxu0 0
      %482 = vmatpush1.bf16.msra.mxu0 0
      %483 = vmatprep.subr.bf16.mxu0 0
      %484 = vmatpush1.bf16.msra.mxu0 0
      %485 = vmatprep.mubr.bf16.mxu0 0
      %486 = vmatmul.mubr.bf16.gmra.mrb[0].mxu0 %v260
      %v487 = vpop.f32.mrb[0].mxu0
      %v488 = vadd.f32 0.0, %v487
      %v489 = vpop.f32.mrb[0].mxu0
      %v490 = vadd.f32 0.0, %v489
      %v491 = vpop.f32.mrb[0].mxu0
      %v492 = vpop.f32.mrb[0].mxu0
      %493 = vdwg.mxu0
      %494 = vmatprep.subr.bf16.mxu0 %v392
      %495 = vmatpush1.bf16.msra.mxu0 %v391
      %496 = vmatprep.subr.bf16.mxu0 %v396
      %497 = vmatpush1.bf16.msra.mxu0 %v395
      %498 = vmatprep.subr.bf16.mxu0 %v400
      %499 = vmatpush1.bf16.msra.mxu0 %v399
      %500 = vmatprep.subr.bf16.mxu0 %v404
      %501 = vmatpush1.bf16.msra.mxu0 %v403
      %502 = vmatprep.subr.bf16.mxu0 %v408
      %503 = vmatpush1.bf16.msra.mxu0 %v407
      %504 = vmatprep.subr.bf16.mxu0 %v412
      %505 = vmatpush1.bf16.msra.mxu0 %v411
      %506 = vmatprep.subr.bf16.mxu0 %v416
      %507 = vmatpush1.bf16.msra.mxu0 %v415
      %508 = vmatprep.subr.bf16.mxu0 %v420
      %509 = vmatpush1.bf16.msra.mxu0 %v419
      %510 = vmatprep.subr.bf16.mxu0 0
      %511 = vmatpush1.bf16.msra.mxu0 0
      %512 = vmatprep.subr.bf16.mxu0 0
      %513 = vmatpush1.bf16.msra.mxu0 0
      %514 = vmatprep.subr.bf16.mxu0 0
      %515 = vmatpush1.bf16.msra.mxu0 0
      %516 = vmatprep.subr.bf16.mxu0 0
      %517 = vmatpush1.bf16.msra.mxu0 0
      %518 = vmatprep.subr.bf16.mxu0 0
      %519 = vmatpush1.bf16.msra.mxu0 0
      %520 = vmatprep.subr.bf16.mxu0 0
      %521 = vmatpush1.bf16.msra.mxu0 0
      %522 = vmatprep.subr.bf16.mxu0 0
      %523 = vmatpush1.bf16.msra.mxu0 0
      %524 = vmatprep.subr.bf16.mxu0 0
      %525 = vmatpush1.bf16.msra.mxu0 0
      %526 = vmatprep.mubr.bf16.mxu0 0
      %527 = vmatmul.mubr.bf16.gmra.mrb[0].mxu0 %v260
      %v528 = vpop.f32.mrb[0].mxu0
      %v529 = vadd.f32 0.0, %v528
      %v530 = vpop.f32.mrb[0].mxu0
      %v531 = vadd.f32 0.0, %v530
      %v532 = vpop.f32.mrb[0].mxu0
      %v533 = vpop.f32.mrb[0].mxu0
      %534 = vdwg.mxu0
      %v535 = vadd.f32 %v256, %v488
      %v536 = vadd.f32 %v257, %v490
      %v537 = vadd.f32 %v258, %v529
      %v538 = vadd.f32 %v259, %v531
      %v539 = vxor.u32 %v535, 2147483648
      %v540 = vmul.f32 %v539, 1.442695
      %v541 = vpow.pop %v540
      %v542 = vadd.f32 %v541, 1.0
      %v543 = vrcp.pop %v542
      %v544 = vmul.f32 1.0, %v543
      %v545 = vxor.u32 %v536, 2147483648
      %v546 = vmul.f32 %v545, 1.442695
      %v547 = vpow.pop %v546
      %v548 = vadd.f32 %v547, 1.0
      %v549 = vrcp.pop %v548
      %v550 = vmul.f32 1.0, %v549
      %v551 = vtanh.pop %v537
      %v552 = vxor.u32 %v538, 2147483648
      %v553 = vmul.f32 %v552, 1.442695
      %v554 = vpow.pop %v553
      %v555 = vadd.f32 %v554, 1.0
      %v556 = vrcp.pop %v555
      %v557 = vmul.f32 1.0, %v556
      %v558 = vmul.f32 %v550, %v255
      %v559 = vmul.f32 %v544, %v551
      %v560 = vadd.f32 %v558, %v559
      %v561 = vtanh.pop %v560
      %v562 = vmul.f32 %v557, %v561
      %v563 = vpack.c.bf16 %v562, %v562
      %564 = vst [vmem:[%s244] sm:$0xf] %v563
      %565 = vst [vmem:[%s5] sm:$0xff] %v562
      %566 = vst [vmem:[%s6] sm:$0xff] %v560
      %p567 = scmp.lt.s32.totalorder %s18, 7
      %s568 = scalar_select %p567, %s18, 7
      %s569 = smul.addr %s568, 4
      %s570 = scalar_lea.vmem %s4, %s569
      // Predicated region
      $region41: #{language_model_forward.2} parent=35 // pred_check
        %p571 = pneg %p125
      $region42: #{language_model_forward.2} parent=35 // pred_check_branch
        %573 = sbr.rel (%p571) target = $region44
      $region43: #{language_model_forward.2} parent=35 // pred_region
        _
      $region44: #{language_model_forward.2} parent=35 // pred_fallthru
        _
      // Predicated region
      $region45: #{language_model_forward.2} parent=35 // pred_check
        %p574 = pneg %p146
      $region46: #{language_model_forward.2} parent=35 // pred_check_branch
        %576 = sbr.rel (%p574) target = $region48
      $region47: #{language_model_forward.2} parent=35 // pred_region
        _
      $region48: #{language_model_forward.2} parent=35 // pred_fallthru
        _
      // Predicated region
      $region49: #{language_model_forward.2} parent=35 // pred_check
        %p577 = pneg %p167
      $region50: #{language_model_forward.2} parent=35 // pred_check_branch
        %579 = sbr.rel (%p577) target = $region52
      $region51: #{language_model_forward.2} parent=35 // pred_region
        _
      $region52: #{language_model_forward.2} parent=35 // pred_fallthru
        _
      // Predicated region
      $region53: #{language_model_forward.2} parent=35 // pred_check
        %p580 = pneg %p146
      $region54: #{language_model_forward.2} parent=35 // pred_check_branch
        %582 = sbr.rel (%p580) target = $region56
      $region55: #{language_model_forward.2} parent=35 // pred_region
        _
      $region56: #{language_model_forward.2} parent=35 // pred_fallthru
        _
      // Predicated region
      $region57: #{language_model_forward.2} parent=35 // pred_check
        %p583 = pneg %p167
      $region58: #{language_model_forward.2} parent=35 // pred_check_branch
        %585 = sbr.rel (%p583) target = $region60
      $region59: #{language_model_forward.2} parent=35 // pred_region
        _
      $region60: #{language_model_forward.2} parent=35 // pred_fallthru
        _
    $region36: #{language_model_forward.2} parent=5 // pred_fallthru
      _
    %p586 = scmp.le.s32.totalorder 2, %s13
    // Predicated region
    $region61: #{language_model_forward.2} parent=5 // pred_check
      %p587 = pneg %p586
    $region62: #{language_model_forward.2} parent=5 // pred_check_branch
      %589 = sbr.rel (%p587) target = $region64
    $region63: #{language_model_forward.2} parent=5 // pred_region
      %s590 = ssub.s32 %s13, 2
      // Predicated region
      $region65: #{language_model_forward.2} parent=63 // pred_check
        %p591 = pneg %p131
      $region66: #{language_model_forward.2} parent=63 // pred_check_branch
        %593 = sbr.rel (%p591) target = $region68
      $region67: #{language_model_forward.2} parent=63 // pred_region
        %p594 = scmp.lt.s32.totalorder %s19, 7
        %s595 = scalar_select %p594, %s19, 7
        %s596 = smul.addr %s595, 4
        %s597 = scalar_lea.vmem %s4, %s596
      $region68: #{language_model_forward.2} parent=63 // pred_fallthru
        _
    $region64: #{language_model_forward.2} parent=5 // pred_fallthru
      _
  $region6: #{language_model_forward.2} parent=0 // loop_footer
    %s17 = sadd.s32 1, %s13
  $region7: #{language_model_forward.2} parent=0 // loop_footer_branch
    %12 = sbr.rel target = $region3
  $region8: #{language_model_forward.2} parent=0 // loop_exit
    _

// kernel: language_model_forward.3
$region0: #{language_model_forward.3}
  #allocation0 [shape = 'u32[]', space=smem, size = 0x4, offset = 0x4, fixed_abs, tag = 'smem constant byte address 0x4 - core index']
  #allocation1 [shape = 'u32[144,128]{1,0:T(1,128)}', space=vmem, size = 0x12000, scoped, tag = 'internal scratch']
  %s0 = inlined_call_operand.vmem [shape: bf16[64,128], index: 0, kind: input, shape index: {}]
  %s1 = inlined_call_operand.vmem [shape: bf16[128,128], index: 1, kind: input, shape index: {}]
  %s2 = inlined_call_operand.vmem [shape: f32[1,128], index: 2, kind: input, shape index: {}]
  %s3 = inlined_call_operand.vmem [shape: f32[64,128], index: 3, kind: output, shape index: {}]
  %s4 = sld [smem:[#allocation0]]
  $region45: #{language_model_forward.3} parent=0
    _
  %s6 = ssub.s32 1, %s4
  %s7 = scalar_select 0, %s6, %s4
  loop: start=0, step=1, limit=4
  $region2: #{language_model_forward.3} parent=0 // loop_pre_header
    _
  $region3: #{language_model_forward.3} parent=0 // loop_header
    %s9 = sphi 0, %s13
    %p10 = scmp.ge.s32.totalorder %s9, 4
    %s19 = sphi 0, %s21
    %s22 = sphi 0, %s19
    %s23 = sphi 0, %s22
    %s39 = sphi 0, %s23
    %s43 = sphi 0, %s43
    %s45 = sphi 0, %s43
    %s46 = sphi 0, %s45
    %s60 = sphi 0, %s46
    %s64 = sphi 0, %s64
    %s66 = sphi 0, %s64
    %s67 = sphi 0, %s66
    %s81 = sphi 0, %s67
    %s87 = sphi 0, %s89
    %s90 = sphi 0, %s87
    %s91 = sphi 0, %s90
    %s107 = sphi 0, %s91
  $region4: #{language_model_forward.3} parent=0 // loop_header_branch
    %12 = sbr.rel (%p10) target = $region8
  $region5: #{language_model_forward.3} parent=0 // loop_body
    %s14 = ssub.s32 %s9, 1
    %s15 = ssub.s32 %s9, 2
    %s16 = sadd.s32 %s9, 1
    %s17 = ssub.s32 %s9, %s16
    %p18 = scmp.eq.s32.totalorder %s17, 0
    %s20 = sadd.s32 %s19, 1
    %s21 = scalar_select %p18, %s19, %s20
    %p24 = pneg %p18
    %p25 = scmp.eq.s32.totalorder %s9, 1
    %p26 = por %p24, %p25
    %p27 = scmp.ne.s32.totalorder %s19, %s22
    %p28 = scmp.eq.s32.totalorder %s9, 0
    %p29 = por %p27, %p28
    %p30 = scmp.ne.s32.totalorder %s19, %s22
    %p31 = scmp.eq.s32.totalorder %s14, 1
    %p32 = por %p30, %p31
    %p33 = scmp.ne.s32.totalorder %s22, %s23
    %p34 = scmp.eq.s32.totalorder %s14, 0
    %p35 = por %p33, %p34
    %p36 = scmp.ne.s32.totalorder %s22, %s23
    %p37 = scmp.eq.s32.totalorder %s15, 1
    %p38 = por %p36, %p37
    %p40 = scmp.ne.s32.totalorder %s23, %s39
    %p41 = scmp.eq.s32.totalorder %s15, 0
    %p42 = por %p40, %p41
    %s44 = sadd.s32 %s43, 1
    %p47 = scmp.eq.s32.totalorder %s9, 1
    %p48 = scmp.ne.s32.totalorder %s43, %s45
    %p49 = scmp.eq.s32.totalorder %s9, 0
    %p50 = por %p48, %p49
    %p51 = scmp.ne.s32.totalorder %s43, %s45
    %p52 = scmp.eq.s32.totalorder %s14, 1
    %p53 = por %p51, %p52
    %p54 = scmp.ne.s32.totalorder %s45, %s46
    %p55 = scmp.eq.s32.totalorder %s14, 0
    %p56 = por %p54, %p55
    %p57 = scmp.ne.s32.totalorder %s45, %s46
    %p58 = scmp.eq.s32.totalorder %s15, 1
    %p59 = por %p57, %p58
    %p61 = scmp.ne.s32.totalorder %s46, %s60
    %p62 = scmp.eq.s32.totalorder %s15, 0
    %p63 = por %p61, %p62
    %s65 = sadd.s32 %s64, 1
    %p68 = scmp.eq.s32.totalorder %s9, 1
    %p69 = scmp.ne.s32.totalorder %s64, %s66
    %p70 = scmp.eq.s32.totalorder %s9, 0
    %p71 = por %p69, %p70
    %p72 = scmp.ne.s32.totalorder %s64, %s66
    %p73 = scmp.eq.s32.totalorder %s14, 1
    %p74 = por %p72, %p73
    %p75 = scmp.ne.s32.totalorder %s66, %s67
    %p76 = scmp.eq.s32.totalorder %s14, 0
    %p77 = por %p75, %p76
    %p78 = scmp.ne.s32.totalorder %s66, %s67
    %p79 = scmp.eq.s32.totalorder %s15, 1
    %p80 = por %p78, %p79
    %p82 = scmp.ne.s32.totalorder %s67, %s81
    %p83 = scmp.eq.s32.totalorder %s15, 0
    %p84 = por %p82, %p83
    %s85 = ssub.s32 %s9, %s16
    %p86 = scmp.eq.s32.totalorder %s85, 0
    %s88 = sadd.s32 %s87, 1
    %s89 = scalar_select %p86, %s87, %s88
    %p92 = pneg %p86
    %p93 = scmp.eq.s32.totalorder %s9, 1
    %p94 = por %p92, %p93
    %p95 = scmp.ne.s32.totalorder %s87, %s90
    %p96 = scmp.eq.s32.totalorder %s9, 0
    %p97 = por %p95, %p96
    %p98 = scmp.ne.s32.totalorder %s87, %s90
    %p99 = scmp.eq.s32.totalorder %s14, 1
    %p100 = por %p98, %p99
    %p101 = scmp.ne.s32.totalorder %s90, %s91
    %p102 = scmp.eq.s32.totalorder %s14, 0
    %p103 = por %p101, %p102
    %p104 = scmp.ne.s32.totalorder %s90, %s91
    %p105 = scmp.eq.s32.totalorder %s15, 1
    %p106 = por %p104, %p105
    %p108 = scmp.ne.s32.totalorder %s91, %s107
    %p109 = scmp.eq.s32.totalorder %s15, 0
    %p110 = por %p108, %p109
    %p111 = scmp.le.s32.totalorder 1, %s9
    %p112 = scmp.lt.s32.totalorder %s9, 3
    %p113 = pnand %p111, %p112
    %p114 = pneg %p113
    // Predicated region
    $region9: #{language_model_forward.3} parent=5 // pred_check
      _
    $region10: #{language_model_forward.3} parent=5 // pred_check_branch
      %116 = sbr.rel (%p113) target = $region12
    $region11: #{language_model_forward.3} parent=5 // pred_region
      %s117 = ssub.s32 %s9, 1
      // Predicated region
      $region13: #{language_model_forward.3} parent=11 // pred_check
        %p118 = pneg %p56
      $region14: #{language_model_forward.3} parent=11 // pred_check_branch
        %120 = sbr.rel (%p118) target = $region16
      $region15: #{language_model_forward.3} parent=11 // pred_region
        _
      $region16: #{language_model_forward.3} parent=11 // pred_fallthru
        _
      // Predicated region
      $region17: #{language_model_forward.3} parent=11 // pred_check
        %p121 = pneg %p77
      $region18: #{language_model_forward.3} parent=11 // pred_check_branch
        %123 = sbr.rel (%p121) target = $region20
      $region19: #{language_model_forward.3} parent=11 // pred_region
        _
      $region20: #{language_model_forward.3} parent=11 // pred_fallthru
        _
    $region12: #{language_model_forward.3} parent=5 // pred_fallthru
      _
    %p124 = scmp.lt.s32.totalorder %s9, 2
    // Predicated region
    $region21: #{language_model_forward.3} parent=5 // pred_check
      %p125 = pneg %p124
    $region22: #{language_model_forward.3} parent=5 // pred_check_branch
      %127 = sbr.rel (%p125) target = $region24
    $region23: #{language_model_forward.3} parent=5 // pred_region
      // Predicated region
      $region25: #{language_model_forward.3} parent=23 // pred_check
        %p128 = pneg %p29
      $region26: #{language_model_forward.3} parent=23 // pred_check_branch
        %130 = sbr.rel (%p128) target = $region28
      $region27: #{language_model_forward.3} parent=23 // pred_region
        %s131 = smul.u32 4, %s9
        %p132 = scmp.lt.s32.totalorder %s131, 7
        %s133 = scalar_select %p132, %s131, 7
        %s134 = smul.addr %s133, 4
        %s135 = scalar_lea.vmem %s0, %s134
        %s136 = smul.u32 4, %s9
      $region28: #{language_model_forward.3} parent=23 // pred_fallthru
        _
    $region24: #{language_model_forward.3} parent=5 // pred_fallthru
      _
    %p137 = scmp.le.s32.totalorder 1, %s9
    %p138 = scmp.lt.s32.totalorder %s9, 3
    %p139 = pnand %p137, %p138
    %p140 = pneg %p139
    // Predicated region
    $region29: #{language_model_forward.3} parent=5 // pred_check
      _
    $region30: #{language_model_forward.3} parent=5 // pred_check_branch
      %142 = sbr.rel (%p139) target = $region32
    $region31: #{language_model_forward.3} parent=5 // pred_region
      %s143 = ssub.s32 %s9, 1
      %s144 = smul.u32 4, %s14
      %p145 = scmp.lt.s32.totalorder %s144, 7
      %s146 = scalar_select %p145, %s144, 7
      %s147 = smul.addr %s146, 4
      %s148 = scalar_lea.vmem %s0, %s147
      %p149 = pneg %p35
      %p150 = pneg %p32
      %p151 = pneg %p56
      %p152 = pneg %p53
      %p153 = pneg %p77
      %p154 = pneg %p74
      %p155 = pneg %p103
      %p156 = pneg %p100
      %s157 = smul.u32 4, %s14
      %p158 = scmp.lt.s32.totalorder %s157, 7
      %s159 = scalar_select %p158, %s157, 7
      %s160 = smul.addr %s159, 8
      %s161 = scalar_lea.vmem %s3, %s160
      %s162 = smul.u32 4, %s14
      %p163 = scmp.lt.s32.totalorder %s162, 7
      %s164 = scalar_select %p163, %s162, 7
      %s165 = smul.addr %s164, 4
      %s166 = scalar_lea.vmem %s0, %s165
      %s167 = smul.u32 4, %s14
      %s168 = smul.u32 4, %s14
      %p169 = scmp.lt.s32.totalorder %s168, 7
      %s170 = scalar_select %p169, %s168, 7
      %s171 = smul.addr %s170, 8
      %s172 = scalar_lea.vmem %s3, %s171
      %s173 = smul.u32 4, %s14
      %v175 = vld [vmem:[%s166] sm:$0xf]
      %v176 = vld [vmem:[%s166 + $0x4] sm:$0xf]
      %v177 = vld [vmem:[%s166 + $0x8] sm:$0xf]
      %v178 = vld [vmem:[%s166 + $0xc] sm:$0xf]
      %v179 = vld [vmem:[%s1] sm:$0xf]
      %v180 = vld [vmem:[%s1 + $0x4] sm:$0xf]
      %v181 = vld [vmem:[%s1 + $0x8] sm:$0xf]
      %v182 = vld [vmem:[%s1 + $0xc] sm:$0xf]
      %v183 = vld [vmem:[%s1 + $0x10] sm:$0xf]
      %v184 = vld [vmem:[%s1 + $0x14] sm:$0xf]
      %v185 = vld [vmem:[%s1 + $0x18] sm:$0xf]
      %v186 = vld [vmem:[%s1 + $0x1c] sm:$0xf]
      %v187 = vld [vmem:[%s1 + $0x20] sm:$0xf]
      %v188 = vld [vmem:[%s1 + $0x24] sm:$0xf]
      %v189 = vld [vmem:[%s1 + $0x28] sm:$0xf]
      %v190 = vld [vmem:[%s1 + $0x2c] sm:$0xf]
      %v191 = vld [vmem:[%s1 + $0x30] sm:$0xf]
      %v192 = vld [vmem:[%s1 + $0x34] sm:$0xf]
      %v193 = vld [vmem:[%s1 + $0x38] sm:$0xf]
      %v194 = vld [vmem:[%s1 + $0x3c] sm:$0xf]
      %v195 = vld [vmem:[%s2] sm:$0x1]
      %v197 = vlaneseq
      %v198 = vshrl.u32 %v197, 7
      %v199 = vsub.s32 0, %v198
      %v200 = vrot.slane %v195, %v199
      %v206 = vunpack.c.l.b16 %v175
      %v207 = vunpack.c.l.b16 %v176
      %v208 = vunpack.c.l.b16 %v177
      %v209 = vunpack.c.l.b16 %v178
      %v210 = vpack.c.b16 %v207, %v206
      %v211 = vpack.c.b16 %v209, %v208
      %v230 = vunpack.c.l.b16 %v179
      %v231 = vunpack.c.l.b16 %v180
      %v232 = vunpack.c.l.b16 %v181
      %v233 = vunpack.c.l.b16 %v182
      %v234 = vunpack.c.l.b16 %v183
      %v235 = vunpack.c.l.b16 %v184
      %v236 = vunpack.c.l.b16 %v185
      %v237 = vunpack.c.l.b16 %v186
      %v238 = vunpack.c.l.b16 %v187
      %v239 = vunpack.c.l.b16 %v188
      %v240 = vunpack.c.l.b16 %v189
      %v241 = vunpack.c.l.b16 %v190
      %v242 = vunpack.c.l.b16 %v191
      %v243 = vunpack.c.l.b16 %v192
      %v244 = vunpack.c.l.b16 %v193
      %v245 = vunpack.c.l.b16 %v194
      %v246 = vpack.c.b16 %v231, %v230
      %v247 = vpack.c.b16 %v233, %v232
      %v248 = vpack.c.b16 %v235, %v234
      %v249 = vpack.c.b16 %v237, %v236
      %v250 = vpack.c.b16 %v239, %v238
      %v251 = vpack.c.b16 %v241, %v240
      %v252 = vpack.c.b16 %v243, %v242
      %v253 = vpack.c.b16 %v245, %v244
      %262 = vmatprep.subr.bf16.mxu0 0
      %263 = vmatpush1.bf16.msra.mxu0 %v246
      %264 = vmatprep.subr.bf16.mxu0 0
      %265 = vmatpush1.bf16.msra.mxu0 %v247
      %266 = vmatprep.subr.bf16.mxu0 0
      %267 = vmatpush1.bf16.msra.mxu0 %v248
      %268 = vmatprep.subr.bf16.mxu0 0
      %269 = vmatpush1.bf16.msra.mxu0 %v249
      %270 = vmatprep.subr.bf16.mxu0 0
      %271 = vmatpush1.bf16.msra.mxu0 %v250
      %272 = vmatprep.subr.bf16.mxu0 0
      %273 = vmatpush1.bf16.msra.mxu0 %v251
      %274 = vmatprep.subr.bf16.mxu0 0
      %275 = vmatpush1.bf16.msra.mxu0 %v252
      %276 = vmatprep.subr.bf16.mxu0 0
      %277 = vmatpush1.bf16.msra.mxu0 %v253
      %278 = vmatprep.subr.bf16.mxu0 0
      %279 = vmatpush1.bf16.msra.mxu0 0
      %280 = vmatprep.subr.bf16.mxu0 0
      %281 = vmatpush1.bf16.msra.mxu0 0
      %282 = vmatprep.subr.bf16.mxu0 0
      %283 = vmatpush1.bf16.msra.mxu0 0
      %284 = vmatprep.subr.bf16.mxu0 0
      %285 = vmatpush1.bf16.msra.mxu0 0
      %286 = vmatprep.subr.bf16.mxu0 0
      %287 = vmatpush1.bf16.msra.mxu0 0
      %288 = vmatprep.subr.bf16.mxu0 0
      %289 = vmatpush1.bf16.msra.mxu0 0
      %290 = vmatprep.subr.bf16.mxu0 0
      %291 = vmatpush1.bf16.msra.mxu0 0
      %292 = vmatprep.subr.bf16.mxu0 0
      %293 = vmatpush1.bf16.msra.mxu0 0
      %294 = vmatprep.mubr.bf16.mxu0 0
      %295 = vmatmul.mubr.bf16.gmra.mrb[0].mxu0 %v210
      %v296 = vpop.f32.mrb[0].mxu0
      %v297 = vadd.f32 %v200, %v296
      %v298 = vpop.f32.mrb[0].mxu0
      %v299 = vpop.f32.mrb[0].mxu0
      %v300 = vadd.f32 %v200, %v299
      %v301 = vpop.f32.mrb[0].mxu0
      %302 = vmatprep.mubr.bf16.mxu0 0
      %303 = vmatmul.mubr.bf16.gmra.mrb[0].mxu0 %v211
      %v304 = vpop.f32.mrb[0].mxu0
      %v305 = vadd.f32 %v200, %v304
      %v306 = vpop.f32.mrb[0].mxu0
      %v307 = vpop.f32.mrb[0].mxu0
      %v308 = vadd.f32 %v200, %v307
      %v309 = vpop.f32.mrb[0].mxu0
      %310 = vdwg.mxu0
      %311 = vmax.xlane.f32.xlu0 %v297
      %v312 = vpop.xlane.xlu0 %311
      %313 = vmax.xlane.f32.xlu0 %v300
      %v314 = vpop.xlane.xlu0 %313
      %315 = vmax.xlane.f32.xlu0 %v305
      %v316 = vpop.xlane.xlu0 %315
      %317 = vmax.xlane.f32.xlu0 %v308
      %v318 = vpop.xlane.xlu0 %317
      %v319 = vsub.f32 %v297, %v312
      %v320 = vsub.f32 %v300, %v314
      %v321 = vsub.f32 %v305, %v316
      %v322 = vsub.f32 %v308, %v318
      %v323 = vmul.f32 %v319, 1.442695
      %v324 = vpow.pop %v323
      %v325 = vmul.f32 %v320, 1.442695
      %v326 = vpow.pop %v325
      %v327 = vmul.f32 %v321, 1.442695
      %v328 = vpow.pop %v327
      %v329 = vmul.f32 %v322, 1.442695
      %v330 = vpow.pop %v329
      %331 = vadd.xlane.f32.xlu0 %v324
      %v332 = vpop.xlane.xlu0 %331
      %333 = vadd.xlane.f32.xlu0 %v326
      %v334 = vpop.xlane.xlu0 %333
      %335 = vadd.xlane.f32.xlu0 %v328
      %v336 = vpop.xlane.xlu0 %335
      %337 = vadd.xlane.f32.xlu0 %v330
      %v338 = vpop.xlane.xlu0 %337
      %v339 = vlog2.pop %v332
      %v340 = vmul.f32 %v339, 0.6931472
      %v341 = vlog2.pop %v334
      %v342 = vmul.f32 %v341, 0.6931472
      %v343 = vlog2.pop %v336
      %v344 = vmul.f32 %v343, 0.6931472
      %v345 = vlog2.pop %v338
      %v346 = vmul.f32 %v345, 0.6931472
      %v347 = vsub.f32 %v319, %v340
      %v348 = vsub.f32 %v320, %v342
      %v349 = vsub.f32 %v321, %v344
      %v350 = vsub.f32 %v322, %v346
      %351 = vst [vmem:[%s172] sm:$0xff] %v347
      %352 = vst [vmem:[%s172 + $0x8] sm:$0xff] %v348
      %353 = vst [vmem:[%s172 + $0x10] sm:$0xff] %v349
      %354 = vst [vmem:[%s172 + $0x18] sm:$0xff] %v350
      %s355 = smul.u32 4, %s14
      %p356 = scmp.lt.s32.totalorder %s355, 7
      %s357 = scalar_select %p356, %s355, 7
      %s358 = smul.addr %s357, 8
      %s359 = scalar_lea.vmem %s3, %s358
      // Predicated region
      $region33: #{language_model_forward.3} parent=31 // pred_check
        %p360 = pneg %p100
      $region34: #{language_model_forward.3} parent=31 // pred_check_branch
        %362 = sbr.rel (%p360) target = $region36
      $region35: #{language_model_forward.3} parent=31 // pred_region
        %s363 = smul.u32 4, %s14
      $region36: #{language_model_forward.3} parent=31 // pred_fallthru
        _
    $region32: #{language_model_forward.3} parent=5 // pred_fallthru
      _
    %p364 = scmp.le.s32.totalorder 2, %s9
    // Predicated region
    $region37: #{language_model_forward.3} parent=5 // pred_check
      %p365 = pneg %p364
    $region38: #{language_model_forward.3} parent=5 // pred_check_branch
      %367 = sbr.rel (%p365) target = $region40
    $region39: #{language_model_forward.3} parent=5 // pred_region
      %s368 = ssub.s32 %s9, 2
      // Predicated region
      $region41: #{language_model_forward.3} parent=39 // pred_check
        %p369 = pneg %p106
      $region42: #{language_model_forward.3} parent=39 // pred_check_branch
        %371 = sbr.rel (%p369) target = $region44
      $region43: #{language_model_forward.3} parent=39 // pred_region
        %s372 = smul.u32 4, %s15
        %p373 = scmp.lt.s32.totalorder %s372, 7
        %s374 = scalar_select %p373, %s372, 7
        %s375 = smul.addr %s374, 8
        %s376 = scalar_lea.vmem %s3, %s375
      $region44: #{language_model_forward.3} parent=39 // pred_fallthru
        _
    $region40: #{language_model_forward.3} parent=5 // pred_fallthru
      _
  $region6: #{language_model_forward.3} parent=0 // loop_footer
    %s13 = sadd.s32 1, %s9
  $region7: #{language_model_forward.3} parent=0 // loop_footer_branch
    %8 = sbr.rel target = $region3
  $region8: #{language_model_forward.3} parent=0 // loop_exit
    _

// kernel: language_model_forward.3
$region0: #{language_model_forward.3}
  #allocation0 [shape = 'u32[]', space=smem, size = 0x4, offset = 0x4, fixed_abs, tag = 'smem constant byte address 0x4 - core index']
  #allocation1 [shape = 'u32[144,128]{1,0:T(1,128)}', space=vmem, size = 0x12000, scoped, tag = 'internal scratch']
  %s0 = inlined_call_operand.vmem [shape: bf16[64,128], index: 0, kind: input, shape index: {}]
  %s1 = inlined_call_operand.vmem [shape: bf16[128,128], index: 1, kind: input, shape index: {}]
  %s2 = inlined_call_operand.vmem [shape: f32[1,128], index: 2, kind: input, shape index: {}]
  %s3 = inlined_call_operand.vmem [shape: f32[64,128], index: 3, kind: output, shape index: {}]
  %s4 = sld [smem:[#allocation0]]
  $region45: #{language_model_forward.3} parent=0
    _
  %s6 = ssub.s32 1, %s4
  %s7 = scalar_select 0, %s6, %s4
  loop: start=0, step=1, limit=4
  $region2: #{language_model_forward.3} parent=0 // loop_pre_header
    _
  $region3: #{language_model_forward.3} parent=0 // loop_header
    %s9 = sphi 0, %s13
    %p10 = scmp.ge.s32.totalorder %s9, 4
    %s19 = sphi 0, %s21
    %s22 = sphi 0, %s19
    %s23 = sphi 0, %s22
    %s39 = sphi 0, %s23
    %s43 = sphi 0, %s43
    %s45 = sphi 0, %s43
    %s46 = sphi 0, %s45
    %s60 = sphi 0, %s46
    %s64 = sphi 0, %s64
    %s66 = sphi 0, %s64
    %s67 = sphi 0, %s66
    %s81 = sphi 0, %s67
    %s87 = sphi 0, %s89
    %s90 = sphi 0, %s87
    %s91 = sphi 0, %s90
    %s107 = sphi 0, %s91
  $region4: #{language_model_forward.3} parent=0 // loop_header_branch
    %12 = sbr.rel (%p10) target = $region8
  $region5: #{language_model_forward.3} parent=0 // loop_body
    %s14 = ssub.s32 %s9, 1
    %s15 = ssub.s32 %s9, 2
    %s16 = sadd.s32 %s9, 1
    %s17 = ssub.s32 %s9, %s16
    %p18 = scmp.eq.s32.totalorder %s17, 0
    %s20 = sadd.s32 %s19, 1
    %s21 = scalar_select %p18, %s19, %s20
    %p24 = pneg %p18
    %p25 = scmp.eq.s32.totalorder %s9, 1
    %p26 = por %p24, %p25
    %p27 = scmp.ne.s32.totalorder %s19, %s22
    %p28 = scmp.eq.s32.totalorder %s9, 0
    %p29 = por %p27, %p28
    %p30 = scmp.ne.s32.totalorder %s19, %s22
    %p31 = scmp.eq.s32.totalorder %s14, 1
    %p32 = por %p30, %p31
    %p33 = scmp.ne.s32.totalorder %s22, %s23
    %p34 = scmp.eq.s32.totalorder %s14, 0
    %p35 = por %p33, %p34
    %p36 = scmp.ne.s32.totalorder %s22, %s23
    %p37 = scmp.eq.s32.totalorder %s15, 1
    %p38 = por %p36, %p37
    %p40 = scmp.ne.s32.totalorder %s23, %s39
    %p41 = scmp.eq.s32.totalorder %s15, 0
    %p42 = por %p40, %p41
    %s44 = sadd.s32 %s43, 1
    %p47 = scmp.eq.s32.totalorder %s9, 1
    %p48 = scmp.ne.s32.totalorder %s43, %s45
    %p49 = scmp.eq.s32.totalorder %s9, 0
    %p50 = por %p48, %p49
    %p51 = scmp.ne.s32.totalorder %s43, %s45
    %p52 = scmp.eq.s32.totalorder %s14, 1
    %p53 = por %p51, %p52
    %p54 = scmp.ne.s32.totalorder %s45, %s46
    %p55 = scmp.eq.s32.totalorder %s14, 0
    %p56 = por %p54, %p55
    %p57 = scmp.ne.s32.totalorder %s45, %s46
    %p58 = scmp.eq.s32.totalorder %s15, 1
    %p59 = por %p57, %p58
    %p61 = scmp.ne.s32.totalorder %s46, %s60
    %p62 = scmp.eq.s32.totalorder %s15, 0
    %p63 = por %p61, %p62
    %s65 = sadd.s32 %s64, 1
    %p68 = scmp.eq.s32.totalorder %s9, 1
    %p69 = scmp.ne.s32.totalorder %s64, %s66
    %p70 = scmp.eq.s32.totalorder %s9, 0
    %p71 = por %p69, %p70
    %p72 = scmp.ne.s32.totalorder %s64, %s66
    %p73 = scmp.eq.s32.totalorder %s14, 1
    %p74 = por %p72, %p73
    %p75 = scmp.ne.s32.totalorder %s66, %s67
    %p76 = scmp.eq.s32.totalorder %s14, 0
    %p77 = por %p75, %p76
    %p78 = scmp.ne.s32.totalorder %s66, %s67
    %p79 = scmp.eq.s32.totalorder %s15, 1
    %p80 = por %p78, %p79
    %p82 = scmp.ne.s32.totalorder %s67, %s81
    %p83 = scmp.eq.s32.totalorder %s15, 0
    %p84 = por %p82, %p83
    %s85 = ssub.s32 %s9, %s16
    %p86 = scmp.eq.s32.totalorder %s85, 0
    %s88 = sadd.s32 %s87, 1
    %s89 = scalar_select %p86, %s87, %s88
    %p92 = pneg %p86
    %p93 = scmp.eq.s32.totalorder %s9, 1
    %p94 = por %p92, %p93
    %p95 = scmp.ne.s32.totalorder %s87, %s90
    %p96 = scmp.eq.s32.totalorder %s9, 0
    %p97 = por %p95, %p96
    %p98 = scmp.ne.s32.totalorder %s87, %s90
    %p99 = scmp.eq.s32.totalorder %s14, 1
    %p100 = por %p98, %p99
    %p101 = scmp.ne.s32.totalorder %s90, %s91
    %p102 = scmp.eq.s32.totalorder %s14, 0
    %p103 = por %p101, %p102
    %p104 = scmp.ne.s32.totalorder %s90, %s91
    %p105 = scmp.eq.s32.totalorder %s15, 1
    %p106 = por %p104, %p105
    %p108 = scmp.ne.s32.totalorder %s91, %s107
    %p109 = scmp.eq.s32.totalorder %s15, 0
    %p110 = por %p108, %p109
    %p111 = scmp.le.s32.totalorder 1, %s9
    %p112 = scmp.lt.s32.totalorder %s9, 3
    %p113 = pnand %p111, %p112
    %p114 = pneg %p113
    // Predicated region
    $region9: #{language_model_forward.3} parent=5 // pred_check
      _
    $region10: #{language_model_forward.3} parent=5 // pred_check_branch
      %116 = sbr.rel (%p113) target = $region12
    $region11: #{language_model_forward.3} parent=5 // pred_region
      %s117 = ssub.s32 %s9, 1
      // Predicated region
      $region13: #{language_model_forward.3} parent=11 // pred_check
        %p118 = pneg %p56
      $region14: #{language_model_forward.3} parent=11 // pred_check_branch
        %120 = sbr.rel (%p118) target = $region16
      $region15: #{language_model_forward.3} parent=11 // pred_region
        _
      $region16: #{language_model_forward.3} parent=11 // pred_fallthru
        _
      // Predicated region
      $region17: #{language_model_forward.3} parent=11 // pred_check
        %p121 = pneg %p77
      $region18: #{language_model_forward.3} parent=11 // pred_check_branch
        %123 = sbr.rel (%p121) target = $region20
      $region19: #{language_model_forward.3} parent=11 // pred_region
        _
      $region20: #{language_model_forward.3} parent=11 // pred_fallthru
        _
    $region12: #{language_model_forward.3} parent=5 // pred_fallthru
      _
    %p124 = scmp.lt.s32.totalorder %s9, 2
    // Predicated region
    $region21: #{language_model_forward.3} parent=5 // pred_check
      %p125 = pneg %p124
    $region22: #{language_model_forward.3} parent=5 // pred_check_branch
      %127 = sbr.rel (%p125) target = $region24
    $region23: #{language_model_forward.3} parent=5 // pred_region
      // Predicated region
      $region25: #{language_model_forward.3} parent=23 // pred_check
        %p128 = pneg %p29
      $region26: #{language_model_forward.3} parent=23 // pred_check_branch
        %130 = sbr.rel (%p128) target = $region28
      $region27: #{language_model_forward.3} parent=23 // pred_region
        %s131 = smul.u32 4, %s9
        %p132 = scmp.lt.s32.totalorder %s131, 7
        %s133 = scalar_select %p132, %s131, 7
        %s134 = smul.addr %s133, 4
        %s135 = scalar_lea.vmem %s0, %s134
        %s136 = smul.u32 4, %s9
      $region28: #{language_model_forward.3} parent=23 // pred_fallthru
        _
    $region24: #{language_model_forward.3} parent=5 // pred_fallthru
      _
    %p137 = scmp.le.s32.totalorder 1, %s9
    %p138 = scmp.lt.s32.totalorder %s9, 3
    %p139 = pnand %p137, %p138
    %p140 = pneg %p139
    // Predicated region
    $region29: #{language_model_forward.3} parent=5 // pred_check
      _
    $region30: #{language_model_forward.3} parent=5 // pred_check_branch
      %142 = sbr.rel (%p139) target = $region32
    $region31: #{language_model_forward.3} parent=5 // pred_region
      %s143 = ssub.s32 %s9, 1
      %s144 = smul.u32 4, %s14
      %p145 = scmp.lt.s32.totalorder %s144, 7
      %s146 = scalar_select %p145, %s144, 7
      %s147 = smul.addr %s146, 4
      %s148 = scalar_lea.vmem %s0, %s147
      %p149 = pneg %p35
      %p150 = pneg %p32
      %p151 = pneg %p56
      %p152 = pneg %p53
      %p153 = pneg %p77
      %p154 = pneg %p74
      %p155 = pneg %p103
      %p156 = pneg %p100
      %s157 = smul.u32 4, %s14
      %p158 = scmp.lt.s32.totalorder %s157, 7
      %s159 = scalar_select %p158, %s157, 7
      %s160 = smul.addr %s159, 8
      %s161 = scalar_lea.vmem %s3, %s160
      %s162 = smul.u32 4, %s14
      %p163 = scmp.lt.s32.totalorder %s162, 7
      %s164 = scalar_select %p163, %s162, 7
      %s165 = smul.addr %s164, 4
      %s166 = scalar_lea.vmem %s0, %s165
      %s167 = smul.u32 4, %s14
      %s168 = smul.u32 4, %s14
      %p169 = scmp.lt.s32.totalorder %s168, 7
      %s170 = scalar_select %p169, %s168, 7
      %s171 = smul.addr %s170, 8
      %s172 = scalar_lea.vmem %s3, %s171
      %s173 = smul.u32 4, %s14
      %v175 = vld [vmem:[%s166] sm:$0xf]
      %v176 = vld [vmem:[%s166 + $0x4] sm:$0xf]
      %v177 = vld [vmem:[%s166 + $0x8] sm:$0xf]
      %v178 = vld [vmem:[%s166 + $0xc] sm:$0xf]
      %v179 = vld [vmem:[%s1] sm:$0xf]
      %v180 = vld [vmem:[%s1 + $0x4] sm:$0xf]
      %v181 = vld [vmem:[%s1 + $0x8] sm:$0xf]
      %v182 = vld [vmem:[%s1 + $0xc] sm:$0xf]
      %v183 = vld [vmem:[%s1 + $0x10] sm:$0xf]
      %v184 = vld [vmem:[%s1 + $0x14] sm:$0xf]
      %v185 = vld [vmem:[%s1 + $0x18] sm:$0xf]
      %v186 = vld [vmem:[%s1 + $0x1c] sm:$0xf]
      %v187 = vld [vmem:[%s1 + $0x20] sm:$0xf]
      %v188 = vld [vmem:[%s1 + $0x24] sm:$0xf]
      %v189 = vld [vmem:[%s1 + $0x28] sm:$0xf]
      %v190 = vld [vmem:[%s1 + $0x2c] sm:$0xf]
      %v191 = vld [vmem:[%s1 + $0x30] sm:$0xf]
      %v192 = vld [vmem:[%s1 + $0x34] sm:$0xf]
      %v193 = vld [vmem:[%s1 + $0x38] sm:$0xf]
      %v194 = vld [vmem:[%s1 + $0x3c] sm:$0xf]
      %v195 = vld [vmem:[%s2] sm:$0x1]
      %v197 = vlaneseq
      %v198 = vshrl.u32 %v197, 7
      %v199 = vsub.s32 0, %v198
      %v200 = vrot.slane %v195, %v199
      %v206 = vunpack.c.l.b16 %v175
      %v207 = vunpack.c.l.b16 %v176
      %v208 = vunpack.c.l.b16 %v177
      %v209 = vunpack.c.l.b16 %v178
      %v210 = vpack.c.b16 %v207, %v206
      %v211 = vpack.c.b16 %v209, %v208
      %v230 = vunpack.c.l.b16 %v179
      %v231 = vunpack.c.l.b16 %v180
      %v232 = vunpack.c.l.b16 %v181
      %v233 = vunpack.c.l.b16 %v182
      %v234 = vunpack.c.l.b16 %v183
      %v235 = vunpack.c.l.b16 %v184
      %v236 = vunpack.c.l.b16 %v185
      %v237 = vunpack.c.l.b16 %v186
      %v238 = vunpack.c.l.b16 %v187
      %v239 = vunpack.c.l.b16 %v188
      %v240 = vunpack.c.l.b16 %v189
      %v241 = vunpack.c.l.b16 %v190
      %v242 = vunpack.c.l.b16 %v191
      %v243 = vunpack.c.l.b16 %v192
      %v244 = vunpack.c.l.b16 %v193
      %v245 = vunpack.c.l.b16 %v194
      %v246 = vpack.c.b16 %v231, %v230
      %v247 = vpack.c.b16 %v233, %v232
      %v248 = vpack.c.b16 %v235, %v234
      %v249 = vpack.c.b16 %v237, %v236
      %v250 = vpack.c.b16 %v239, %v238
      %v251 = vpack.c.b16 %v241, %v240
      %v252 = vpack.c.b16 %v243, %v242
      %v253 = vpack.c.b16 %v245, %v244
      %262 = vmatprep.subr.bf16.mxu0 0
      %263 = vmatpush1.bf16.msra.mxu0 %v246
      %264 = vmatprep.subr.bf16.mxu0 0
      %265 = vmatpush1.bf16.msra.mxu0 %v247
      %266 = vmatprep.subr.bf16.mxu0 0
      %267 = vmatpush1.bf16.msra.mxu0 %v248
      %268 = vmatprep.subr.bf16.mxu0 0
      %269 = vmatpush1.bf16.msra.mxu0 %v249
      %270 = vmatprep.subr.bf16.mxu0 0
      %271 = vmatpush1.bf16.msra.mxu0 %v250
      %272 = vmatprep.subr.bf16.mxu0 0
      %273 = vmatpush1.bf16.msra.mxu0 %v251
      %274 = vmatprep.subr.bf16.mxu0 0
      %275 = vmatpush1.bf16.msra.mxu0 %v252
      %276 = vmatprep.subr.bf16.mxu0 0
      %277 = vmatpush1.bf16.msra.mxu0 %v253
      %278 = vmatprep.subr.bf16.mxu0 0
      %279 = vmatpush1.bf16.msra.mxu0 0
      %280 = vmatprep.subr.bf16.mxu0 0
      %281 = vmatpush1.bf16.msra.mxu0 0
      %282 = vmatprep.subr.bf16.mxu0 0
      %283 = vmatpush1.bf16.msra.mxu0 0
      %284 = vmatprep.subr.bf16.mxu0 0
      %285 = vmatpush1.bf16.msra.mxu0 0
      %286 = vmatprep.subr.bf16.mxu0 0
      %287 = vmatpush1.bf16.msra.mxu0 0
      %288 = vmatprep.subr.bf16.mxu0 0
      %289 = vmatpush1.bf16.msra.mxu0 0
      %290 = vmatprep.subr.bf16.mxu0 0
      %291 = vmatpush1.bf16.msra.mxu0 0
      %292 = vmatprep.subr.bf16.mxu0 0
      %293 = vmatpush1.bf16.msra.mxu0 0
      %294 = vmatprep.mubr.bf16.mxu0 0
      %295 = vmatmul.mubr.bf16.gmra.mrb[0].mxu0 %v210
      %v296 = vpop.f32.mrb[0].mxu0
      %v297 = vadd.f32 %v200, %v296
      %v298 = vpop.f32.mrb[0].mxu0
      %v299 = vpop.f32.mrb[0].mxu0
      %v300 = vadd.f32 %v200, %v299
      %v301 = vpop.f32.mrb[0].mxu0
      %302 = vmatprep.mubr.bf16.mxu0 0
      %303 = vmatmul.mubr.bf16.gmra.mrb[0].mxu0 %v211
      %v304 = vpop.f32.mrb[0].mxu0
      %v305 = vadd.f32 %v200, %v304
      %v306 = vpop.f32.mrb[0].mxu0
      %v307 = vpop.f32.mrb[0].mxu0
      %v308 = vadd.f32 %v200, %v307
      %v309 = vpop.f32.mrb[0].mxu0
      %310 = vdwg.mxu0
      %311 = vmax.xlane.f32.xlu0 %v297
      %v312 = vpop.xlane.xlu0 %311
      %313 = vmax.xlane.f32.xlu0 %v300
      %v314 = vpop.xlane.xlu0 %313
      %315 = vmax.xlane.f32.xlu0 %v305
      %v316 = vpop.xlane.xlu0 %315
      %317 = vmax.xlane.f32.xlu0 %v308
      %v318 = vpop.xlane.xlu0 %317
      %v319 = vsub.f32 %v297, %v312
      %v320 = vsub.f32 %v300, %v314
      %v321 = vsub.f32 %v305, %v316
      %v322 = vsub.f32 %v308, %v318
      %v323 = vmul.f32 %v319, 1.442695
      %v324 = vpow.pop %v323
      %v325 = vmul.f32 %v320, 1.442695
      %v326 = vpow.pop %v325
      %v327 = vmul.f32 %v321, 1.442695
      %v328 = vpow.pop %v327
      %v329 = vmul.f32 %v322, 1.442695
      %v330 = vpow.pop %v329
      %331 = vadd.xlane.f32.xlu0 %v324
      %v332 = vpop.xlane.xlu0 %331
      %333 = vadd.xlane.f32.xlu0 %v326
      %v334 = vpop.xlane.xlu0 %333
      %335 = vadd.xlane.f32.xlu0 %v328
      %v336 = vpop.xlane.xlu0 %335
      %337 = vadd.xlane.f32.xlu0 %v330
      %v338 = vpop.xlane.xlu0 %337
      %v339 = vlog2.pop %v332
      %v340 = vmul.f32 %v339, 0.6931472
      %v341 = vlog2.pop %v334
      %v342 = vmul.f32 %v341, 0.6931472
      %v343 = vlog2.pop %v336
      %v344 = vmul.f32 %v343, 0.6931472
      %v345 = vlog2.pop %v338
      %v346 = vmul.f32 %v345, 0.6931472
      %v347 = vsub.f32 %v319, %v340
      %v348 = vsub.f32 %v320, %v342
      %v349 = vsub.f32 %v321, %v344
      %v350 = vsub.f32 %v322, %v346
      %351 = vst [vmem:[%s172] sm:$0xff] %v347
      %352 = vst [vmem:[%s172 + $0x8] sm:$0xff] %v348
      %353 = vst [vmem:[%s172 + $0x10] sm:$0xff] %v349
      %354 = vst [vmem:[%s172 + $0x18] sm:$0xff] %v350
      %s355 = smul.u32 4, %s14
      %p356 = scmp.lt.s32.totalorder %s355, 7
      %s357 = scalar_select %p356, %s355, 7
      %s358 = smul.addr %s357, 8
      %s359 = scalar_lea.vmem %s3, %s358
      // Predicated region
      $region33: #{language_model_forward.3} parent=31 // pred_check
        %p360 = pneg %p100
      $region34: #{language_model_forward.3} parent=31 // pred_check_branch
        %362 = sbr.rel (%p360) target = $region36
      $region35: #{language_model_forward.3} parent=31 // pred_region
        %s363 = smul.u32 4, %s14
      $region36: #{language_model_forward.3} parent=31 // pred_fallthru
        _
    $region32: #{language_model_forward.3} parent=5 // pred_fallthru
      _
    %p364 = scmp.le.s32.totalorder 2, %s9
    // Predicated region
    $region37: #{language_model_forward.3} parent=5 // pred_check
      %p365 = pneg %p364
    $region38: #{language_model_forward.3} parent=5 // pred_check_branch
      %367 = sbr.rel (%p365) target = $region40
    $region39: #{language_model_forward.3} parent=5 // pred_region
      %s368 = ssub.s32 %s9, 2
      // Predicated region
      $region41: #{language_model_forward.3} parent=39 // pred_check
        %p369 = pneg %p106
      $region42: #{language_model_forward.3} parent=39 // pred_check_branch
        %371 = sbr.rel (%p369) target = $region44
      $region43: #{language_model_forward.3} parent=39 // pred_region
        %s372 = smul.u32 4, %s15
        %p373 = scmp.lt.s32.totalorder %s372, 7
        %s374 = scalar_select %p373, %s372, 7
        %s375 = smul.addr %s374, 8
        %s376 = scalar_lea.vmem %s3, %s375
      $region44: #{language_model_forward.3} parent=39 // pred_fallthru
        _
    $region40: #{language_model_forward.3} parent=5 // pred_fallthru
      _
  $region6: #{language_model_forward.3} parent=0 // loop_footer
    %s13 = sadd.s32 1, %s9
  $region7: #{language_model_forward.3} parent=0 // loop_footer_branch
    %8 = sbr.rel target = $region3
  $region8: #{language_model_forward.3} parent=0 // loop_exit
    _

// kernel: language_model_forward.2
$region0: #{language_model_forward.2}
  #allocation0 [shape = 'u32[]', space=smem, size = 0x4, offset = 0x4, fixed_abs, tag = 'smem constant byte address 0x4 - core index']
  #allocation1 [shape = 'u32[144,128]{1,0:T(1,128)}', space=vmem, size = 0x12000, scoped, tag = 'internal scratch']
  %s0 = inlined_call_operand.vmem [shape: f32[8,8,512], index: 0, kind: input, shape index: {}]
  %s1 = inlined_call_operand.vmem [shape: f32[8,128], index: 1, kind: input, shape index: {}]
  %s2 = inlined_call_operand.vmem [shape: f32[8,128], index: 2, kind: input, shape index: {}]
  %s3 = inlined_call_operand.vmem [shape: bf16[128,512], index: 3, kind: input, shape index: {}]
  %s4 = inlined_call_operand.vmem [shape: bf16[8,8,128], index: 4, kind: output, shape index: {0}]
  %s5 = inlined_call_operand.vmem [shape: f32[8,128], index: 5, kind: output, shape index: {1}]
  %s6 = inlined_call_operand.vmem [shape: f32[8,128], index: 6, kind: output, shape index: {2}]
  %7 = xla_tuple %s4, %s5, %s6
  %s8 = sld [smem:[#allocation0]]
  $region69: #{language_model_forward.2} parent=0
    _
  %s10 = ssub.s32 1, %s8
  %s11 = scalar_select 0, %s10, %s8
  loop: start=0, step=1, limit=10
  $region2: #{language_model_forward.2} parent=0 // loop_pre_header
    _
  $region3: #{language_model_forward.2} parent=0 // loop_header
    %s13 = sphi 0, %s17
    %p14 = scmp.ge.s32.totalorder %s13, 10
    %s23 = sphi 0, %s25
    %s26 = sphi 0, %s23
    %s27 = sphi 0, %s26
    %s43 = sphi 0, %s27
    %s47 = sphi 0, %s47
    %s49 = sphi 0, %s47
    %s50 = sphi 0, %s49
    %s64 = sphi 0, %s50
    %s68 = sphi 0, %s68
    %s70 = sphi 0, %s68
    %s71 = sphi 0, %s70
    %s85 = sphi 0, %s71
    %s89 = sphi 0, %s89
    %s91 = sphi 0, %s89
    %s92 = sphi 0, %s91
    %s106 = sphi 0, %s92
    %s112 = sphi 0, %s114
    %s115 = sphi 0, %s112
    %s116 = sphi 0, %s115
    %s132 = sphi 0, %s116
    %s136 = sphi 0, %s136
    %s138 = sphi 0, %s136
    %s139 = sphi 0, %s138
    %s153 = sphi 0, %s139
    %s157 = sphi 0, %s157
    %s159 = sphi 0, %s157
    %s160 = sphi 0, %s159
    %s174 = sphi 0, %s160
  $region4: #{language_model_forward.2} parent=0 // loop_header_branch
    %16 = sbr.rel (%p14) target = $region8
  $region5: #{language_model_forward.2} parent=0 // loop_body
    %s18 = ssub.s32 %s13, 1
    %s19 = ssub.s32 %s13, 2
    %s20 = sadd.s32 %s13, 1
    %s21 = ssub.s32 %s13, %s20
    %p22 = scmp.eq.s32.totalorder %s21, 0
    %s24 = sadd.s32 %s23, 1
    %s25 = scalar_select %p22, %s23, %s24
    %p28 = pneg %p22
    %p29 = scmp.eq.s32.totalorder %s13, 7
    %p30 = por %p28, %p29
    %p31 = scmp.ne.s32.totalorder %s23, %s26
    %p32 = scmp.eq.s32.totalorder %s13, 0
    %p33 = por %p31, %p32
    %p34 = scmp.ne.s32.totalorder %s23, %s26
    %p35 = scmp.eq.s32.totalorder %s18, 7
    %p36 = por %p34, %p35
    %p37 = scmp.ne.s32.totalorder %s26, %s27
    %p38 = scmp.eq.s32.totalorder %s18, 0
    %p39 = por %p37, %p38
    %p40 = scmp.ne.s32.totalorder %s26, %s27
    %p41 = scmp.eq.s32.totalorder %s19, 7
    %p42 = por %p40, %p41
    %p44 = scmp.ne.s32.totalorder %s27, %s43
    %p45 = scmp.eq.s32.totalorder %s19, 0
    %p46 = por %p44, %p45
    %s48 = sadd.s32 %s47, 1
    %p51 = scmp.eq.s32.totalorder %s13, 7
    %p52 = scmp.ne.s32.totalorder %s47, %s49
    %p53 = scmp.eq.s32.totalorder %s13, 0
    %p54 = por %p52, %p53
    %p55 = scmp.ne.s32.totalorder %s47, %s49
    %p56 = scmp.eq.s32.totalorder %s18, 7
    %p57 = por %p55, %p56
    %p58 = scmp.ne.s32.totalorder %s49, %s50
    %p59 = scmp.eq.s32.totalorder %s18, 0
    %p60 = por %p58, %p59
    %p61 = scmp.ne.s32.totalorder %s49, %s50
    %p62 = scmp.eq.s32.totalorder %s19, 7
    %p63 = por %p61, %p62
    %p65 = scmp.ne.s32.totalorder %s50, %s64
    %p66 = scmp.eq.s32.totalorder %s19, 0
    %p67 = por %p65, %p66
    %s69 = sadd.s32 %s68, 1
    %p72 = scmp.eq.s32.totalorder %s13, 7
    %p73 = scmp.ne.s32.totalorder %s68, %s70
    %p74 = scmp.eq.s32.totalorder %s13, 0
    %p75 = por %p73, %p74
    %p76 = scmp.ne.s32.totalorder %s68, %s70
    %p77 = scmp.eq.s32.totalorder %s18, 7
    %p78 = por %p76, %p77
    %p79 = scmp.ne.s32.totalorder %s70, %s71
    %p80 = scmp.eq.s32.totalorder %s18, 0
    %p81 = por %p79, %p80
    %p82 = scmp.ne.s32.totalorder %s70, %s71
    %p83 = scmp.eq.s32.totalorder %s19, 7
    %p84 = por %p82, %p83
    %p86 = scmp.ne.s32.totalorder %s71, %s85
    %p87 = scmp.eq.s32.totalorder %s19, 0
    %p88 = por %p86, %p87
    %s90 = sadd.s32 %s89, 1
    %p93 = scmp.eq.s32.totalorder %s13, 7
    %p94 = scmp.ne.s32.totalorder %s89, %s91
    %p95 = scmp.eq.s32.totalorder %s13, 0
    %p96 = por %p94, %p95
    %p97 = scmp.ne.s32.totalorder %s89, %s91
    %p98 = scmp.eq.s32.totalorder %s18, 7
    %p99 = por %p97, %p98
    %p100 = scmp.ne.s32.totalorder %s91, %s92
    %p101 = scmp.eq.s32.totalorder %s18, 0
    %p102 = por %p100, %p101
    %p103 = scmp.ne.s32.totalorder %s91, %s92
    %p104 = scmp.eq.s32.totalorder %s19, 7
    %p105 = por %p103, %p104
    %p107 = scmp.ne.s32.totalorder %s92, %s106
    %p108 = scmp.eq.s32.totalorder %s19, 0
    %p109 = por %p107, %p108
    %s110 = ssub.s32 %s13, %s20
    %p111 = scmp.eq.s32.totalorder %s110, 0
    %s113 = sadd.s32 %s112, 1
    %s114 = scalar_select %p111, %s112, %s113
    %p117 = pneg %p111
    %p118 = scmp.eq.s32.totalorder %s13, 7
    %p119 = por %p117, %p118
    %p120 = scmp.ne.s32.totalorder %s112, %s115
    %p121 = scmp.eq.s32.totalorder %s13, 0
    %p122 = por %p120, %p121
    %p123 = scmp.ne.s32.totalorder %s112, %s115
    %p124 = scmp.eq.s32.totalorder %s18, 7
    %p125 = por %p123, %p124
    %p126 = scmp.ne.s32.totalorder %s115, %s116
    %p127 = scmp.eq.s32.totalorder %s18, 0
    %p128 = por %p126, %p127
    %p129 = scmp.ne.s32.totalorder %s115, %s116
    %p130 = scmp.eq.s32.totalorder %s19, 7
    %p131 = por %p129, %p130
    %p133 = scmp.ne.s32.totalorder %s116, %s132
    %p134 = scmp.eq.s32.totalorder %s19, 0
    %p135 = por %p133, %p134
    %s137 = sadd.s32 %s136, 1
    %p140 = scmp.eq.s32.totalorder %s13, 7
    %p141 = scmp.ne.s32.totalorder %s136, %s138
    %p142 = scmp.eq.s32.totalorder %s13, 0
    %p143 = por %p141, %p142
    %p144 = scmp.ne.s32.totalorder %s136, %s138
    %p145 = scmp.eq.s32.totalorder %s18, 7
    %p146 = por %p144, %p145
    %p147 = scmp.ne.s32.totalorder %s138, %s139
    %p148 = scmp.eq.s32.totalorder %s18, 0
    %p149 = por %p147, %p148
    %p150 = scmp.ne.s32.totalorder %s138, %s139
    %p151 = scmp.eq.s32.totalorder %s19, 7
    %p152 = por %p150, %p151
    %p154 = scmp.ne.s32.totalorder %s139, %s153
    %p155 = scmp.eq.s32.totalorder %s19, 0
    %p156 = por %p154, %p155
    %s158 = sadd.s32 %s157, 1
    %p161 = scmp.eq.s32.totalorder %s13, 7
    %p162 = scmp.ne.s32.totalorder %s157, %s159
    %p163 = scmp.eq.s32.totalorder %s13, 0
    %p164 = por %p162, %p163
    %p165 = scmp.ne.s32.totalorder %s157, %s159
    %p166 = scmp.eq.s32.totalorder %s18, 7
    %p167 = por %p165, %p166
    %p168 = scmp.ne.s32.totalorder %s159, %s160
    %p169 = scmp.eq.s32.totalorder %s18, 0
    %p170 = por %p168, %p169
    %p171 = scmp.ne.s32.totalorder %s159, %s160
    %p172 = scmp.eq.s32.totalorder %s19, 7
    %p173 = por %p171, %p172
    %p175 = scmp.ne.s32.totalorder %s160, %s174
    %p176 = scmp.eq.s32.totalorder %s19, 0
    %p177 = por %p175, %p176
    %p178 = scmp.le.s32.totalorder 1, %s13
    %p179 = scmp.lt.s32.totalorder %s13, 9
    %p180 = pnand %p178, %p179
    %p181 = pneg %p180
    // Predicated region
    $region9: #{language_model_forward.2} parent=5 // pred_check
      _
    $region10: #{language_model_forward.2} parent=5 // pred_check_branch
      %183 = sbr.rel (%p180) target = $region12
    $region11: #{language_model_forward.2} parent=5 // pred_region
      %s184 = ssub.s32 %s13, 1
      // Predicated region
      $region13: #{language_model_forward.2} parent=11 // pred_check
        %p185 = pneg %p60
      $region14: #{language_model_forward.2} parent=11 // pred_check_branch
        %187 = sbr.rel (%p185) target = $region16
      $region15: #{language_model_forward.2} parent=11 // pred_region
        _
      $region16: #{language_model_forward.2} parent=11 // pred_fallthru
        _
      // Predicated region
      $region17: #{language_model_forward.2} parent=11 // pred_check
        %p188 = pneg %p81
      $region18: #{language_model_forward.2} parent=11 // pred_check_branch
        %190 = sbr.rel (%p188) target = $region20
      $region19: #{language_model_forward.2} parent=11 // pred_region
        _
      $region20: #{language_model_forward.2} parent=11 // pred_fallthru
        _
      // Predicated region
      $region21: #{language_model_forward.2} parent=11 // pred_check
        %p191 = pneg %p102
      $region22: #{language_model_forward.2} parent=11 // pred_check_branch
        %193 = sbr.rel (%p191) target = $region24
      $region23: #{language_model_forward.2} parent=11 // pred_region
        _
      $region24: #{language_model_forward.2} parent=11 // pred_fallthru
        _
    $region12: #{language_model_forward.2} parent=5 // pred_fallthru
      _
    %p194 = scmp.lt.s32.totalorder %s13, 8
    // Predicated region
    $region25: #{language_model_forward.2} parent=5 // pred_check
      %p195 = pneg %p194
    $region26: #{language_model_forward.2} parent=5 // pred_check_branch
      %197 = sbr.rel (%p195) target = $region28
    $region27: #{language_model_forward.2} parent=5 // pred_region
      // Predicated region
      $region29: #{language_model_forward.2} parent=27 // pred_check
        %p198 = pneg %p33
      $region30: #{language_model_forward.2} parent=27 // pred_check_branch
        %200 = sbr.rel (%p198) target = $region32
      $region31: #{language_model_forward.2} parent=27 // pred_region
        %p201 = scmp.lt.s32.totalorder %s13, 7
        %s202 = scalar_select %p201, %s13, 7
        %s203 = smul.addr %s202, 4
        %s204 = smul.addr %s203, 8
        %s205 = scalar_lea.vmem %s0, %s204
      $region32: #{language_model_forward.2} parent=27 // pred_fallthru
        _
    $region28: #{language_model_forward.2} parent=5 // pred_fallthru
      _
    %p206 = scmp.le.s32.totalorder 1, %s13
    %p207 = scmp.lt.s32.totalorder %s13, 9
    %p208 = pnand %p206, %p207
    %p209 = pneg %p208
    // Predicated region
    $region33: #{language_model_forward.2} parent=5 // pred_check
      _
    $region34: #{language_model_forward.2} parent=5 // pred_check_branch
      %211 = sbr.rel (%p208) target = $region36
    $region35: #{language_model_forward.2} parent=5 // pred_region
      %s212 = ssub.s32 %s13, 1
      %p213 = scmp.lt.s32.totalorder %s18, 7
      %s214 = scalar_select %p213, %s18, 7
      %s215 = smul.addr %s214, 4
      %s216 = smul.addr %s215, 8
      %s217 = scalar_lea.vmem %s0, %s216
      %p218 = pneg %p39
      %p219 = pneg %p36
      %p220 = pneg %p60
      %p221 = pneg %p57
      %p222 = pneg %p81
      %p223 = pneg %p78
      %p224 = pneg %p102
      %p225 = pneg %p99
      %p226 = pneg %p128
      %p227 = pneg %p125
      %p228 = scmp.lt.s32.totalorder %s18, 7
      %s229 = scalar_select %p228, %s18, 7
      %s230 = smul.addr %s229, 4
      %s231 = scalar_lea.vmem %s4, %s230
      %p232 = pneg %p149
      %p233 = pneg %p146
      %p234 = pneg %p170
      %p235 = pneg %p167
      %p236 = scmp.lt.s32.totalorder %s18, 7
      %s237 = scalar_select %p236, %s18, 7
      %s238 = smul.addr %s237, 4
      %s239 = smul.addr %s238, 8
      %s240 = scalar_lea.vmem %s0, %s239
      %p241 = scmp.lt.s32.totalorder %s18, 7
      %s242 = scalar_select %p241, %s18, 7
      %s243 = smul.addr %s242, 4
      %s244 = scalar_lea.vmem %s4, %s243
      %p246 = scmp.eq.s32.totalorder %s18, 0
      // Predicated region
      $region37: #{language_model_forward.2} parent=35 // pred_check
        %p247 = pneg %p246
      $region38: #{language_model_forward.2} parent=35 // pred_check_branch
        %249 = sbr.rel (%p247) target = $region40
      $region39: #{language_model_forward.2} parent=35 // pred_region
        %v250 = vld [vmem:[%s1] sm:$0xff]
        %251 = vst [vmem:[%s5] sm:$0xff] %v250
        %v252 = vld [vmem:[%s2] sm:$0xff]
        %253 = vst [vmem:[%s6] sm:$0xff] %v252
      $region40: #{language_model_forward.2} parent=35 // pred_fallthru
        _
      %v254 = vld [vmem:[%s5] sm:$0xff]
      %v255 = vld [vmem:[%s6] sm:$0xff]
      %v256 = vld [vmem:[%s240] sm:$0xff]
      %v257 = vld [vmem:[%s240 + $0x8] sm:$0xff]
      %v258 = vld [vmem:[%s240 + $0x10] sm:$0xff]
      %v259 = vld [vmem:[%s240 + $0x18] sm:$0xff]
      %v260 = vpack.c.bf16 %v254, %v254
      %v261 = vld [vmem:[%s3] sm:$0xff]
      %v262 = vld [vmem:[%s3 + $0x8] sm:$0xff]
      %v263 = vld [vmem:[%s3 + $0x10] sm:$0xff]
      %v264 = vld [vmem:[%s3 + $0x18] sm:$0xff]
      %v265 = vld [vmem:[%s3 + $0x20] sm:$0xff]
      %v266 = vld [vmem:[%s3 + $0x28] sm:$0xff]
      %v267 = vld [vmem:[%s3 + $0x30] sm:$0xff]
      %v268 = vld [vmem:[%s3 + $0x38] sm:$0xff]
      %v269 = vld [vmem:[%s3 + $0x40] sm:$0xff]
      %v270 = vld [vmem:[%s3 + $0x48] sm:$0xff]
      %v271 = vld [vmem:[%s3 + $0x50] sm:$0xff]
      %v272 = vld [vmem:[%s3 + $0x58] sm:$0xff]
      %v273 = vld [vmem:[%s3 + $0x60] sm:$0xff]
      %v274 = vld [vmem:[%s3 + $0x68] sm:$0xff]
      %v275 = vld [vmem:[%s3 + $0x70] sm:$0xff]
      %v276 = vld [vmem:[%s3 + $0x78] sm:$0xff]
      %v277 = vld [vmem:[%s3 + $0x80] sm:$0xff]
      %v278 = vld [vmem:[%s3 + $0x88] sm:$0xff]
      %v279 = vld [vmem:[%s3 + $0x90] sm:$0xff]
      %v280 = vld [vmem:[%s3 + $0x98] sm:$0xff]
      %v281 = vld [vmem:[%s3 + $0xa0] sm:$0xff]
      %v282 = vld [vmem:[%s3 + $0xa8] sm:$0xff]
      %v283 = vld [vmem:[%s3 + $0xb0] sm:$0xff]
      %v284 = vld [vmem:[%s3 + $0xb8] sm:$0xff]
      %v285 = vld [vmem:[%s3 + $0xc0] sm:$0xff]
      %v286 = vld [vmem:[%s3 + $0xc8] sm:$0xff]
      %v287 = vld [vmem:[%s3 + $0xd0] sm:$0xff]
      %v288 = vld [vmem:[%s3 + $0xd8] sm:$0xff]
      %v289 = vld [vmem:[%s3 + $0xe0] sm:$0xff]
      %v290 = vld [vmem:[%s3 + $0xe8] sm:$0xff]
      %v291 = vld [vmem:[%s3 + $0xf0] sm:$0xff]
      %v292 = vld [vmem:[%s3 + $0xf8] sm:$0xff]
      %v325 = vunpack.c.l.b16 %v261
      %v326 = vunpack.c.h.b16 %v261
      %v327 = vunpack.c.l.b16 %v262
      %v328 = vunpack.c.h.b16 %v262
      %v329 = vunpack.c.l.b16 %v263
      %v330 = vunpack.c.h.b16 %v263
      %v331 = vunpack.c.l.b16 %v264
      %v332 = vunpack.c.h.b16 %v264
      %v333 = vunpack.c.l.b16 %v265
      %v334 = vunpack.c.h.b16 %v265
      %v335 = vunpack.c.l.b16 %v266
      %v336 = vunpack.c.h.b16 %v266
      %v337 = vunpack.c.l.b16 %v267
      %v338 = vunpack.c.h.b16 %v267
      %v339 = vunpack.c.l.b16 %v268
      %v340 = vunpack.c.h.b16 %v268
      %v341 = vunpack.c.l.b16 %v269
      %v342 = vunpack.c.h.b16 %v269
      %v343 = vunpack.c.l.b16 %v270
      %v344 = vunpack.c.h.b16 %v270
      %v345 = vunpack.c.l.b16 %v271
      %v346 = vunpack.c.h.b16 %v271
      %v347 = vunpack.c.l.b16 %v272
      %v348 = vunpack.c.h.b16 %v272
      %v349 = vunpack.c.l.b16 %v273
      %v350 = vunpack.c.h.b16 %v273
      %v351 = vunpack.c.l.b16 %v274
      %v352 = vunpack.c.h.b16 %v274
      %v353 = vunpack.c.l.b16 %v275
      %v354 = vunpack.c.h.b16 %v275
      %v355 = vunpack.c.l.b16 %v276
      %v356 = vunpack.c.h.b16 %v276
      %v357 = vunpack.c.l.b16 %v277
      %v358 = vunpack.c.h.b16 %v277
      %v359 = vunpack.c.l.b16 %v278
      %v360 = vunpack.c.h.b16 %v278
      %v361 = vunpack.c.l.b16 %v279
      %v362 = vunpack.c.h.b16 %v279
      %v363 = vunpack.c.l.b16 %v280
      %v364 = vunpack.c.h.b16 %v280
      %v365 = vunpack.c.l.b16 %v281
      %v366 = vunpack.c.h.b16 %v281
      %v367 = vunpack.c.l.b16 %v282
      %v368 = vunpack.c.h.b16 %v282
      %v369 = vunpack.c.l.b16 %v283
      %v370 = vunpack.c.h.b16 %v283
      %v371 = vunpack.c.l.b16 %v284
      %v372 = vunpack.c.h.b16 %v284
      %v373 = vunpack.c.l.b16 %v285
      %v374 = vunpack.c.h.b16 %v285
      %v375 = vunpack.c.l.b16 %v286
      %v376 = vunpack.c.h.b16 %v286
      %v377 = vunpack.c.l.b16 %v287
      %v378 = vunpack.c.h.b16 %v287
      %v379 = vunpack.c.l.b16 %v288
      %v380 = vunpack.c.h.b16 %v288
      %v381 = vunpack.c.l.b16 %v289
      %v382 = vunpack.c.h.b16 %v289
      %v383 = vunpack.c.l.b16 %v290
      %v384 = vunpack.c.h.b16 %v290
      %v385 = vunpack.c.l.b16 %v291
      %v386 = vunpack.c.h.b16 %v291
      %v387 = vunpack.c.l.b16 %v292
      %v388 = vunpack.c.h.b16 %v292
      %v389 = vpack.c.b16 %v329, %v325
      %v390 = vpack.c.b16 %v330, %v326
      %v391 = vpack.c.b16 %v331, %v327
      %v392 = vpack.c.b16 %v332, %v328
      %v393 = vpack.c.b16 %v337, %v333
      %v394 = vpack.c.b16 %v338, %v334
      %v395 = vpack.c.b16 %v339, %v335
      %v396 = vpack.c.b16 %v340, %v336
      %v397 = vpack.c.b16 %v345, %v341
      %v398 = vpack.c.b16 %v346, %v342
      %v399 = vpack.c.b16 %v347, %v343
      %v400 = vpack.c.b16 %v348, %v344
      %v401 = vpack.c.b16 %v353, %v349
      %v402 = vpack.c.b16 %v354, %v350
      %v403 = vpack.c.b16 %v355, %v351
      %v404 = vpack.c.b16 %v356, %v352
      %v405 = vpack.c.b16 %v361, %v357
      %v406 = vpack.c.b16 %v362, %v358
      %v407 = vpack.c.b16 %v363, %v359
      %v408 = vpack.c.b16 %v364, %v360
      %v409 = vpack.c.b16 %v369, %v365
      %v410 = vpack.c.b16 %v370, %v366
      %v411 = vpack.c.b16 %v371, %v367
      %v412 = vpack.c.b16 %v372, %v368
      %v413 = vpack.c.b16 %v377, %v373
      %v414 = vpack.c.b16 %v378, %v374
      %v415 = vpack.c.b16 %v379, %v375
      %v416 = vpack.c.b16 %v380, %v376
      %v417 = vpack.c.b16 %v385, %v381
      %v418 = vpack.c.b16 %v386, %v382
      %v419 = vpack.c.b16 %v387, %v383
      %v420 = vpack.c.b16 %v388, %v384
      %453 = vmatprep.subr.bf16.mxu0 %v390
      %454 = vmatpush1.bf16.msra.mxu0 %v389
      %455 = vmatprep.subr.bf16.mxu0 %v394
      %456 = vmatpush1.bf16.msra.mxu0 %v393
      %457 = vmatprep.subr.bf16.mxu0 %v398
      %458 = vmatpush1.bf16.msra.mxu0 %v397
      %459 = vmatprep.subr.bf16.mxu0 %v402
      %460 = vmatpush1.bf16.msra.mxu0 %v401
      %461 = vmatprep.subr.bf16.mxu0 %v406
      %462 = vmatpush1.bf16.msra.mxu0 %v405
      %463 = vmatprep.subr.bf16.mxu0 %v410
      %464 = vmatpush1.bf16.msra.mxu0 %v409
      %465 = vmatprep.subr.bf16.mxu0 %v414
      %466 = vmatpush1.bf16.msra.mxu0 %v413
      %467 = vmatprep.subr.bf16.mxu0 %v418
      %468 = vmatpush1.bf16.msra.mxu0 %v417
      %469 = vmatprep.subr.bf16.mxu0 0
      %470 = vmatpush1.bf16.msra.mxu0 0
      %471 = vmatprep.subr.bf16.mxu0 0
      %472 = vmatpush1.bf16.msra.mxu0 0
      %473 = vmatprep.subr.bf16.mxu0 0
      %474 = vmatpush1.bf16.msra.mxu0 0
      %475 = vmatprep.subr.bf16.mxu0 0
      %476 = vmatpush1.bf16.msra.mxu0 0
      %477 = vmatprep.subr.bf16.mxu0 0
      %478 = vmatpush1.bf16.msra.mxu0 0
      %479 = vmatprep.subr.bf16.mxu0 0
      %480 = vmatpush1.bf16.msra.mxu0 0
      %481 = vmatprep.subr.bf16.mxu0 0
      %482 = vmatpush1.bf16.msra.mxu0 0
      %483 = vmatprep.subr.bf16.mxu0 0
      %484 = vmatpush1.bf16.msra.mxu0 0
      %485 = vmatprep.mubr.bf16.mxu0 0
      %486 = vmatmul.mubr.bf16.gmra.mrb[0].mxu0 %v260
      %v487 = vpop.f32.mrb[0].mxu0
      %v488 = vadd.f32 0.0, %v487
      %v489 = vpop.f32.mrb[0].mxu0
      %v490 = vadd.f32 0.0, %v489
      %v491 = vpop.f32.mrb[0].mxu0
      %v492 = vpop.f32.mrb[0].mxu0
      %493 = vdwg.mxu0
      %494 = vmatprep.subr.bf16.mxu0 %v392
      %495 = vmatpush1.bf16.msra.mxu0 %v391
      %496 = vmatprep.subr.bf16.mxu0 %v396
      %497 = vmatpush1.bf16.msra.mxu0 %v395
      %498 = vmatprep.subr.bf16.mxu0 %v400
      %499 = vmatpush1.bf16.msra.mxu0 %v399
      %500 = vmatprep.subr.bf16.mxu0 %v404
      %501 = vmatpush1.bf16.msra.mxu0 %v403
      %502 = vmatprep.subr.bf16.mxu0 %v408
      %503 = vmatpush1.bf16.msra.mxu0 %v407
      %504 = vmatprep.subr.bf16.mxu0 %v412
      %505 = vmatpush1.bf16.msra.mxu0 %v411
      %506 = vmatprep.subr.bf16.mxu0 %v416
      %507 = vmatpush1.bf16.msra.mxu0 %v415
      %508 = vmatprep.subr.bf16.mxu0 %v420
      %509 = vmatpush1.bf16.msra.mxu0 %v419
      %510 = vmatprep.subr.bf16.mxu0 0
      %511 = vmatpush1.bf16.msra.mxu0 0
      %512 = vmatprep.subr.bf16.mxu0 0
      %513 = vmatpush1.bf16.msra.mxu0 0
      %514 = vmatprep.subr.bf16.mxu0 0
      %515 = vmatpush1.bf16.msra.mxu0 0
      %516 = vmatprep.subr.bf16.mxu0 0
      %517 = vmatpush1.bf16.msra.mxu0 0
      %518 = vmatprep.subr.bf16.mxu0 0
      %519 = vmatpush1.bf16.msra.mxu0 0
      %520 = vmatprep.subr.bf16.mxu0 0
      %521 = vmatpush1.bf16.msra.mxu0 0
      %522 = vmatprep.subr.bf16.mxu0 0
      %523 = vmatpush1.bf16.msra.mxu0 0
      %524 = vmatprep.subr.bf16.mxu0 0
      %525 = vmatpush1.bf16.msra.mxu0 0
      %526 = vmatprep.mubr.bf16.mxu0 0
      %527 = vmatmul.mubr.bf16.gmra.mrb[0].mxu0 %v260
      %v528 = vpop.f32.mrb[0].mxu0
      %v529 = vadd.f32 0.0, %v528
      %v530 = vpop.f32.mrb[0].mxu0
      %v531 = vadd.f32 0.0, %v530
      %v532 = vpop.f32.mrb[0].mxu0
      %v533 = vpop.f32.mrb[0].mxu0
      %534 = vdwg.mxu0
      %v535 = vadd.f32 %v256, %v488
      %v536 = vadd.f32 %v257, %v490
      %v537 = vadd.f32 %v258, %v529
      %v538 = vadd.f32 %v259, %v531
      %v539 = vxor.u32 %v535, 2147483648
      %v540 = vmul.f32 %v539, 1.442695
      %v541 = vpow.pop %v540
      %v542 = vadd.f32 %v541, 1.0
      %v543 = vrcp.pop %v542
      %v544 = vmul.f32 1.0, %v543
      %v545 = vxor.u32 %v536, 2147483648
      %v546 = vmul.f32 %v545, 1.442695
      %v547 = vpow.pop %v546
      %v548 = vadd.f32 %v547, 1.0
      %v549 = vrcp.pop %v548
      %v550 = vmul.f32 1.0, %v549
      %v551 = vtanh.pop %v537
      %v552 = vxor.u32 %v538, 2147483648
      %v553 = vmul.f32 %v552, 1.442695
      %v554 = vpow.pop %v553
      %v555 = vadd.f32 %v554, 1.0
      %v556 = vrcp.pop %v555
      %v557 = vmul.f32 1.0, %v556
      %v558 = vmul.f32 %v550, %v255
      %v559 = vmul.f32 %v544, %v551
      %v560 = vadd.f32 %v558, %v559
      %v561 = vtanh.pop %v560
      %v562 = vmul.f32 %v557, %v561
      %v563 = vpack.c.bf16 %v562, %v562
      %564 = vst [vmem:[%s244] sm:$0xf] %v563
      %565 = vst [vmem:[%s5] sm:$0xff] %v562
      %566 = vst [vmem:[%s6] sm:$0xff] %v560
      %p567 = scmp.lt.s32.totalorder %s18, 7
      %s568 = scalar_select %p567, %s18, 7
      %s569 = smul.addr %s568, 4
      %s570 = scalar_lea.vmem %s4, %s569
      // Predicated region
      $region41: #{language_model_forward.2} parent=35 // pred_check
        %p571 = pneg %p125
      $region42: #{language_model_forward.2} parent=35 // pred_check_branch
        %573 = sbr.rel (%p571) target = $region44
      $region43: #{language_model_forward.2} parent=35 // pred_region
        _
      $region44: #{language_model_forward.2} parent=35 // pred_fallthru
        _
      // Predicated region
      $region45: #{language_model_forward.2} parent=35 // pred_check
        %p574 = pneg %p146
      $region46: #{language_model_forward.2} parent=35 // pred_check_branch
        %576 = sbr.rel (%p574) target = $region48
      $region47: #{language_model_forward.2} parent=35 // pred_region
        _
      $region48: #{language_model_forward.2} parent=35 // pred_fallthru
        _
      // Predicated region
      $region49: #{language_model_forward.2} parent=35 // pred_check
        %p577 = pneg %p167
      $region50: #{language_model_forward.2} parent=35 // pred_check_branch
        %579 = sbr.rel (%p577) target = $region52
      $region51: #{language_model_forward.2} parent=35 // pred_region
        _
      $region52: #{language_model_forward.2} parent=35 // pred_fallthru
        _
      // Predicated region
      $region53: #{language_model_forward.2} parent=35 // pred_check
        %p580 = pneg %p146
      $region54: #{language_model_forward.2} parent=35 // pred_check_branch
        %582 = sbr.rel (%p580) target = $region56
      $region55: #{language_model_forward.2} parent=35 // pred_region
        _
      $region56: #{language_model_forward.2} parent=35 // pred_fallthru
        _
      // Predicated region
      $region57: #{language_model_forward.2} parent=35 // pred_check
        %p583 = pneg %p167
      $region58: #{language_model_forward.2} parent=35 // pred_check_branch
        %585 = sbr.rel (%p583) target = $region60
      $region59: #{language_model_forward.2} parent=35 // pred_region
        _
      $region60: #{language_model_forward.2} parent=35 // pred_fallthru
        _
    $region36: #{language_model_forward.2} parent=5 // pred_fallthru
      _
    %p586 = scmp.le.s32.totalorder 2, %s13
    // Predicated region
    $region61: #{language_model_forward.2} parent=5 // pred_check
      %p587 = pneg %p586
    $region62: #{language_model_forward.2} parent=5 // pred_check_branch
      %589 = sbr.rel (%p587) target = $region64
    $region63: #{language_model_forward.2} parent=5 // pred_region
      %s590 = ssub.s32 %s13, 2
      // Predicated region
      $region65: #{language_model_forward.2} parent=63 // pred_check
        %p591 = pneg %p131
      $region66: #{language_model_forward.2} parent=63 // pred_check_branch
        %593 = sbr.rel (%p591) target = $region68
      $region67: #{language_model_forward.2} parent=63 // pred_region
        %p594 = scmp.lt.s32.totalorder %s19, 7
        %s595 = scalar_select %p594, %s19, 7
        %s596 = smul.addr %s595, 4
        %s597 = scalar_lea.vmem %s4, %s596
      $region68: #{language_model_forward.2} parent=63 // pred_fallthru
        _
    $region64: #{language_model_forward.2} parent=5 // pred_fallthru
      _
  $region6: #{language_model_forward.2} parent=0 // loop_footer
    %s17 = sadd.s32 1, %s13
  $region7: #{language_model_forward.2} parent=0 // loop_footer_branch
    %12 = sbr.rel target = $region3
  $region8: #{language_model_forward.2} parent=0 // loop_exit
    _

</llo_original>
